<compile_context>
chip_gen: v6e
topology: v6e:2x2x1
jax: 0.10.0
libtpu: 0.0.40
codegen_flags: <defaults>
</compile_context>

<pallas_src>
import functools

import jax
import jax.numpy as jnp
from jax.experimental import pallas as pl
from jax.experimental.pallas import tpu as pltpu


# ---------------------------------------------------------------------------
# helpers
# ---------------------------------------------------------------------------

def _round_up(x, m):
    return ((x + m - 1) // m) * m


def _pad2(x, rows, cols):
    r, c = x.shape
    return jnp.pad(x, ((0, rows - r), (0, cols - c)))


def _activate(out, activation, f_out_real):
    """ReLU, or log-softmax masked to the first f_out_real (real) columns."""
    if activation == "relu":
        return jnp.maximum(out, 0.0)
    if activation == "log_softmax":
        col = jax.lax.broadcasted_iota(jnp.int32, out.shape, 1)
        out = jnp.where(col < f_out_real, out, -1e30)  # kill padded class columns
        m = jnp.max(out, axis=-1, keepdims=True)
        z = out - m
        return z - jnp.log(jnp.sum(jnp.exp(z), axis=-1, keepdims=True))
    return out


def _layer_math(a_bf16, h, w_self, w_neigh, b, activation, f_out_real):
    """One SAGEConv(concat=True) layer. Shared by the fused kernel and the
    pure-JAX reference so both use identical numerics: bf16 aggregation matmul
    with f32 accumulation, f32 weight matmuls."""
    agg = jnp.dot(a_bf16, h.astype(jnp.bfloat16),
                  preferred_element_type=jnp.float32)
    out = (jnp.dot(h, w_self, preferred_element_type=jnp.float32)
           + jnp.dot(agg, w_neigh, preferred_element_type=jnp.float32)
           + b)
    return _activate(out, activation, f_out_real)


# ---------------------------------------------------------------------------
# fused whole-network kernel (small graphs: everything resident in VMEM)
# ---------------------------------------------------------------------------

def _sage_fused_kernel(*refs, num_layers, f_out_real):
    # refs = (a, x, [w_self, w_neigh, b] * num_layers, out)
    a = refs[0][...]            # (Np, Np)   bf16
    h = refs[1][...]            # (Np, F0p)  f32
    o_ref = refs[-1]
    for l in range(num_layers):
        w_self = refs[2 + 3 * l][...]
        w_neigh = refs[3 + 3 * l][...]
        b = refs[4 + 3 * l][...]
        act = "relu" if l < num_layers - 1 else "log_softmax"
        h = _layer_math(a, h, w_self, w_neigh, b, act, f_out_real)
        # TODO(synk): training-mode dropout between layers (identity at inference).
    o_ref[...] = h.astype(o_ref.dtype)


def _sage_fused(a_p, x_p, params_p, f_out_real):
    n_p = a_p.shape[0]
    num_layers = len(params_p)
    f_out_p = params_p[-1][2].shape[1]
    flat = [t for layer in params_p for t in layer]

    in_specs = [pl.BlockSpec(a_p.shape, lambda i: (0, 0)),
                pl.BlockSpec(x_p.shape, lambda i: (0, 0))]
    for t in flat:
        in_specs.append(pl.BlockSpec(t.shape, lambda i: (0, 0)))

    io_bytes = (a_p.size * 2 + x_p.size * 4 + n_p * f_out_p * 4
                + sum(t.size * 4 for t in flat))
    fmax = max(x_p.shape[1], max(p[0].shape[1] for p in params_p))
    vmem_limit = min(64 << 20,
                     max(32 << 20, int(2.5 * io_bytes) + 2 * n_p * fmax * 4 + (4 << 20)))

    kernel = functools.partial(_sage_fused_kernel,
                               num_layers=num_layers, f_out_real=f_out_real)
    return pl.pallas_call(
        kernel,
        out_shape=jax.ShapeDtypeStruct((n_p, f_out_p), jnp.float32),
        grid=(1,),
        in_specs=in_specs,
        out_specs=pl.BlockSpec((n_p, f_out_p), lambda i: (0, 0)),
        compiler_params=pltpu.CompilerParams(
            dimension_semantics=("arbitrary",),
            vmem_limit_bytes=vmem_limit),
    )(a_p, x_p, *flat)


# ---------------------------------------------------------------------------
# per-layer K-tiled kernel (general / large graphs)
# ---------------------------------------------------------------------------

def _sage_layer_kernel(a_ref, xk_ref, xi_ref, ws_ref, wn_ref, b_ref, o_ref,
                       agg_ref, *, activation, f_out_real):
    # a_ref : (tile_n, tile_k) bf16   block of mean-adjacency
    # xk_ref: (tile_k, f_in_p) f32    K-block of features (aggregation operand)
    # xi_ref: (tile_n, f_in_p) f32    row-block of features (self term)
    # agg_ref: (tile_n, f_in_p) f32   VMEM accumulator for A @ X
    k = pl.program_id(1)

    @pl.when(k == 0)
    def _():
        agg_ref[...] = jnp.zeros_like(agg_ref)

    agg_ref[...] += jnp.dot(a_ref[...], xk_ref[...].astype(jnp.bfloat16),
                            preferred_element_type=jnp.float32)

    @pl.when(k == pl.num_programs(1) - 1)
    def _():
        out = (jnp.dot(xi_ref[...], ws_ref[...], preferred_element_type=jnp.float32)
               + jnp.dot(agg_ref[...], wn_ref[...], preferred_element_type=jnp.float32)
               + b_ref[...])
        o_ref[...] = _activate(out, activation, f_out_real).astype(o_ref.dtype)


def _sage_layer_tiled(a_p, x_p, w_self, w_neigh, b, *, activation, f_out_real,
                      tile_n, tile_k):
    # TODO(synk): for layers with f_out_p < f_in_p at large N, reorder to
    # A @ (X @ W_neigh) to cut aggregation FLOPs (neutral at 128-padded widths).
    n_p = a_p.shape[0]
    f_in_p = x_p.shape[1]
    f_out_p = w_self.shape[1]
    assert n_p % tile_n == 0 and n_p % tile_k == 0

    blk_bytes = (2 * tile_n * tile_k * 2        # A block (bf16, double-buffered)
                 + 2 * tile_k * f_in_p * 4      # X k-block
                 + 2 * tile_n * f_in_p * 4      # X row-block
                 + 2 * 2 * f_in_p * f_out_p * 4  # weights
                 + 2 * f_out_p * 4              # bias
                 + 2 * tile_n * f_out_p * 4     # output block
                 + tile_n * f_in_p * 4)         # accumulator scratch
    vmem_limit = min(64 << 20, max(32 << 20, int(1.5 * blk_bytes) + (4 << 20)))

    kernel = functools.partial(_sage_layer_kernel,
                               activation=activation, f_out_real=f_out_real)
    return pl.pallas_call(
        kernel,
        out_shape=jax.ShapeDtypeStruct((n_p, f_out_p), jnp.float32),
        grid=(n_p // tile_n, n_p // tile_k),
        in_specs=[
            pl.BlockSpec((tile_n, tile_k), lambda i, k: (i, k)),   # A block
            pl.BlockSpec((tile_k, f_in_p), lambda i, k: (k, 0)),   # X k-block
            pl.BlockSpec((tile_n, f_in_p), lambda i, k: (i, 0)),   # X row-block
            pl.BlockSpec((f_in_p, f_out_p), lambda i, k: (0, 0)),  # W_self
            pl.BlockSpec((f_in_p, f_out_p), lambda i, k: (0, 0)),  # W_neigh
            pl.BlockSpec((1, f_out_p), lambda i, k: (0, 0)),       # bias
        ],
        out_specs=pl.BlockSpec((tile_n, f_out_p), lambda i, k: (i, 0)),
        scratch_shapes=[pltpu.VMEM((tile_n, f_in_p), jnp.float32)],
        compiler_params=pltpu.CompilerParams(
            dimension_semantics=("parallel", "arbitrary"),
            vmem_limit_bytes=vmem_limit),
    )(a_p, x_p, x_p, w_self, w_neigh, b)


# ---------------------------------------------------------------------------
# forward pass
# ---------------------------------------------------------------------------

def sage_forward(x, a, params, *, force_tiled=False):
    """x: (N, F) f32, a: (N, N) f32 mean-adjacency, params: [(w_self, w_neigh, b)]."""
    n = x.shape[0]
    num_layers = len(params)
    f_out_real = params[-1][0].shape[1]

    tile = 256 if n >= 2048 else 128
    n_p = _round_up(max(n, tile), tile)

    f_dims = [x.shape[1]] + [p[0].shape[1] for p in params]
    f_dims_p = [_round_up(f, 128) for f in f_dims]

    a_p = _pad2(a.astype(jnp.float32), n_p, n_p).astype(jnp.bfloat16)
    x_p = _pad2(x.astype(jnp.float32), n_p, f_dims_p[0])
    params_p = []
    for l, (w_self, w_neigh, b) in enumerate(params):
        fi, fo = f_dims_p[l], f_dims_p[l + 1]
        params_p.append((_pad2(w_self, fi, fo), _pad2(w_neigh, fi, fo),
                         _pad2(b, 1, fo)))

    fmax = max(f_dims_p)
    fused_bytes = (a_p.size * 2 + x_p.size * 4 + n_p * f_dims_p[-1] * 4
                   + sum(w.size * 4 + v.size * 4 + bb.size * 4
                         for w, v, bb in params_p)
                   + 2 * n_p * fmax * 4)

    if (not force_tiled) and fused_bytes <= (20 << 20):
        out_p = _sage_fused(a_p, x_p, params_p, f_out_real)
    else:
        h = x_p
        for l, (w_self, w_neigh, b) in enumerate(params_p):
            act = "relu" if l < num_layers - 1 else "log_softmax"
            h = _sage_layer_tiled(a_p, h, w_self, w_neigh, b, activation=act,
                                  f_out_real=f_out_real, tile_n=tile, tile_k=tile)
            # TODO(synk): training-mode dropout between layers (identity at inference).
        out_p = h

    return out_p[:n, :f_out_real]


def sage_reference(x, a, params):
    """Pure-JAX reference with the same numerics (bf16 aggregation, f32 accum)."""
    a_bf = a.astype(jnp.bfloat16)
    h = x.astype(jnp.float32)
    f_out = params[-1][0].shape[1]
    for l, (w_self, w_neigh, b) in enumerate(params):
        act = "relu" if l < len(params) - 1 else "log_softmax"
        h = _layer_math(a_bf, h, w_self, w_neigh, b, act, f_out)
    return h


# ---------------------------------------------------------------------------
# graph / parameter construction
# ---------------------------------------------------------------------------

def build_mean_adjacency(edge_index, num_nodes):
    # TODO(synk): dense (N, N) aggregation is O(N^2); a CSR/segment-sum path is
    # needed for truly large graphs (outside this kernel's scope).
    src, dst = edge_index[0], edge_index[1]
    a = jnp.zeros((num_nodes, num_nodes), jnp.float32).at[dst, src].add(1.0)
    deg = jnp.sum(a, axis=1, keepdims=True)
    return a / jnp.maximum(deg, 1.0)


def init_sage_params(key, in_channels, hidden_channels, out_channels, num_layers):
    dims = ([in_channels] + [hidden_channels] * (num_layers - 1),
            [hidden_channels] * (num_layers - 1) + [out_channels])
    params = []
    for in_c, out_c in zip(*dims):
        key, k1, k2 = jax.random.split(key, 3)
        scale = 1.0 / jnp.sqrt(2.0 * in_c)
        # concat weight (2*in_c, out_c); order is [x_self || x_aggr]
        w = jax.random.uniform(k1, (2 * in_c, out_c), jnp.float32, -scale, scale)
        b = jax.random.uniform(k2, (1, out_c), jnp.float32, -scale, scale)
        params.append((w[:in_c], w[in_c:], b))
    return params


# ---------------------------------------------------------------------------
# main
# ---------------------------------------------------------------------------

if __name__ == "__main__":
    IN_C, HID_C, OUT_C, NUM_LAYERS = 16, 32, 8, 3
    DROPOUT = 0.5  # inference -> identity

    key = jax.random.PRNGKey(0)
    k_x1, k_e1, k_e2, k_p, k_x2, k_e3, k_e4 = jax.random.split(key, 7)
    params = init_sage_params(k_p, IN_C, HID_C, OUT_C, NUM_LAYERS)

    # --- small graph: exercises the fully fused single-pallas_call path ------
    N1, E1 = 128, 512
    x1 = jax.random.normal(k_x1, (N1, IN_C), jnp.float32)
    ei1 = jnp.stack([jax.random.randint(k_e1, (E1,), 0, N1, jnp.int32),
                     jax.random.randint(k_e2, (E1,), 0, N1, jnp.int32)])
    a1 = build_mean_adjacency(ei1, N1)

    out1 = jax.block_until_ready(sage_forward(x1, a1, params))
    ref1 = sage_reference(x1, a1, params)
    assert out1.shape == (N1, OUT_C), out1.shape
    assert jnp.allclose(jnp.sum(jnp.exp(out1), axis=-1), 1.0, atol=1e-3)
    assert jnp.allclose(out1, ref1, atol=5e-2, rtol=5e-2), \
        float(jnp.max(jnp.abs(out1 - ref1)))

    # --- larger, non-multiple-of-tile graph: exercises the K-tiled path ------
    N2, E2 = 300, 3000
    x2 = jax.random.normal(k_x2, (N2, IN_C), jnp.float32)
    ei2 = jnp.stack([jax.random.randint(k_e3, (E2,), 0, N2, jnp.int32),
                     jax.random.randint(k_e4, (E2,), 0, N2, jnp.int32)])
    a2 = build_mean_adjacency(ei2, N2)

    out2 = jax.block_until_ready(sage_forward(x2, a2, params, force_tiled=True))
    ref2 = sage_reference(x2, a2, params)
    assert out2.shape == (N2, OUT_C), out2.shape
    assert jnp.allclose(jnp.sum(jnp.exp(out2), axis=-1), 1.0, atol=1e-3)
    assert jnp.allclose(out2, ref2, atol=5e-2, rtol=5e-2), \
        float(jnp.max(jnp.abs(out2 - ref2)))

    print("KERNEL_OK")
</pallas_src>

<mosaic_0001>
module attributes {stable_mosaic.version = 11 : i64} {
  func.func @_sage_fused_kernel(%arg0: i32, %arg1: memref<128x128xbf16, #tpu.memory_space<vmem>>, %arg2: memref<128x128xf32, #tpu.memory_space<vmem>>, %arg3: memref<128x128xf32, #tpu.memory_space<vmem>>, %arg4: memref<128x128xf32, #tpu.memory_space<vmem>>, %arg5: memref<1x128xf32, #tpu.memory_space<vmem>>, %arg6: memref<128x128xf32, #tpu.memory_space<vmem>>, %arg7: memref<128x128xf32, #tpu.memory_space<vmem>>, %arg8: memref<1x128xf32, #tpu.memory_space<vmem>>, %arg9: memref<128x128xf32, #tpu.memory_space<vmem>>, %arg10: memref<128x128xf32, #tpu.memory_space<vmem>>, %arg11: memref<1x128xf32, #tpu.memory_space<vmem>>, %arg12: memref<128x128xf32, #tpu.memory_space<vmem>>) attributes {dimension_semantics = [#tpu.dimension_semantics<arbitrary>], iteration_bounds = array<i64: 1>, scalar_prefetch = 0 : i64, scratch_operands = 0 : i64, tpu.core_type = #tpu.core_type<tc>, window_params = [{pipeline_mode = #tpu.pipeline_mode<synchronous>, transform_indices = @transform_0, window_bounds = array<i64: 128, 128>}, {pipeline_mode = #tpu.pipeline_mode<synchronous>, transform_indices = @transform_1, window_bounds = array<i64: 128, 128>}, {pipeline_mode = #tpu.pipeline_mode<synchronous>, transform_indices = @transform_2, window_bounds = array<i64: 128, 128>}, {pipeline_mode = #tpu.pipeline_mode<synchronous>, transform_indices = @transform_3, window_bounds = array<i64: 128, 128>}, {pipeline_mode = #tpu.pipeline_mode<synchronous>, transform_indices = @transform_4, window_bounds = array<i64: 1, 128>}, {pipeline_mode = #tpu.pipeline_mode<synchronous>, transform_indices = @transform_5, window_bounds = array<i64: 128, 128>}, {pipeline_mode = #tpu.pipeline_mode<synchronous>, transform_indices = @transform_6, window_bounds = array<i64: 128, 128>}, {pipeline_mode = #tpu.pipeline_mode<synchronous>, transform_indices = @transform_7, window_bounds = array<i64: 1, 128>}, {pipeline_mode = #tpu.pipeline_mode<synchronous>, transform_indices = @transform_8, window_bounds = array<i64: 128, 128>}, {pipeline_mode = #tpu.pipeline_mode<synchronous>, transform_indices = @transform_9, window_bounds = array<i64: 128, 128>}, {pipeline_mode = #tpu.pipeline_mode<synchronous>, transform_indices = @transform_10, window_bounds = array<i64: 1, 128>}, {pipeline_mode = #tpu.pipeline_mode<synchronous>, transform_indices = @transform_11, window_bounds = array<i64: 128, 128>}]} {
    %c0 = arith.constant 0 : index
    %c0_0 = arith.constant 0 : index
    %0 = vector.load %arg1[%c0, %c0_0] : memref<128x128xbf16, #tpu.memory_space<vmem>>, vector<128x128xbf16>
    %c0_1 = arith.constant 0 : index
    %c0_2 = arith.constant 0 : index
    %1 = vector.load %arg2[%c0_1, %c0_2] : memref<128x128xf32, #tpu.memory_space<vmem>>, vector<128x128xf32>
    %c0_3 = arith.constant 0 : index
    %c0_4 = arith.constant 0 : index
    %2 = vector.load %arg3[%c0_3, %c0_4] : memref<128x128xf32, #tpu.memory_space<vmem>>, vector<128x128xf32>
    %c0_5 = arith.constant 0 : index
    %c0_6 = arith.constant 0 : index
    %3 = vector.load %arg4[%c0_5, %c0_6] : memref<128x128xf32, #tpu.memory_space<vmem>>, vector<128x128xf32>
    %c0_7 = arith.constant 0 : index
    %c0_8 = arith.constant 0 : index
    %4 = vector.load %arg5[%c0_7, %c0_8] : memref<1x128xf32, #tpu.memory_space<vmem>>, vector<1x128xf32>
    %5 = arith.truncf %1 : vector<128x128xf32> to vector<128x128xbf16>
    %cst = arith.constant dense<0.000000e+00> : vector<128x128xf32>
    %6 = tpu.matmul %0, %5, %cst {dimension_numbers = #tpu.dot_dimension_numbers<[1], [0], [0], [1], [0, 0, 1, 1], [], []>} : vector<128x128xbf16>, vector<128x128xbf16>, vector<128x128xf32> -> vector<128x128xf32>
    %cst_9 = arith.constant dense<0.000000e+00> : vector<128x128xf32>
    %7 = tpu.matmul %1, %2, %cst_9 {dimension_numbers = #tpu.dot_dimension_numbers<[1], [0], [0], [1], [0, 0, 1, 1], [], []>} : vector<128x128xf32>, vector<128x128xf32>, vector<128x128xf32> -> vector<128x128xf32>
    %cst_10 = arith.constant dense<0.000000e+00> : vector<128x128xf32>
    %8 = tpu.matmul %6, %3, %cst_10 {dimension_numbers = #tpu.dot_dimension_numbers<[1], [0], [0], [1], [0, 0, 1, 1], [], []>} : vector<128x128xf32>, vector<128x128xf32>, vector<128x128xf32> -> vector<128x128xf32>
    %9 = arith.addf %7, %8 : vector<128x128xf32>
    %10 = vector.broadcast %4 : vector<1x128xf32> to vector<128x128xf32>
    %11 = arith.addf %9, %10 : vector<128x128xf32>
    %cst_11 = arith.constant 0.000000e+00 : f32
    %12 = vector.broadcast %cst_11 : f32 to vector<128x128xf32>
    %13 = arith.maximumf %11, %12 : vector<128x128xf32>
    %c0_12 = arith.constant 0 : index
    %c0_13 = arith.constant 0 : index
    %14 = vector.load %arg6[%c0_12, %c0_13] : memref<128x128xf32, #tpu.memory_space<vmem>>, vector<128x128xf32>
    %c0_14 = arith.constant 0 : index
    %c0_15 = arith.constant 0 : index
    %15 = vector.load %arg7[%c0_14, %c0_15] : memref<128x128xf32, #tpu.memory_space<vmem>>, vector<128x128xf32>
    %c0_16 = arith.constant 0 : index
    %c0_17 = arith.constant 0 : index
    %16 = vector.load %arg8[%c0_16, %c0_17] : memref<1x128xf32, #tpu.memory_space<vmem>>, vector<1x128xf32>
    %17 = arith.truncf %13 : vector<128x128xf32> to vector<128x128xbf16>
    %cst_18 = arith.constant dense<0.000000e+00> : vector<128x128xf32>
    %18 = tpu.matmul %0, %17, %cst_18 {dimension_numbers = #tpu.dot_dimension_numbers<[1], [0], [0], [1], [0, 0, 1, 1], [], []>} : vector<128x128xbf16>, vector<128x128xbf16>, vector<128x128xf32> -> vector<128x128xf32>
    %cst_19 = arith.constant dense<0.000000e+00> : vector<128x128xf32>
    %19 = tpu.matmul %13, %14, %cst_19 {dimension_numbers = #tpu.dot_dimension_numbers<[1], [0], [0], [1], [0, 0, 1, 1], [], []>} : vector<128x128xf32>, vector<128x128xf32>, vector<128x128xf32> -> vector<128x128xf32>
    %cst_20 = arith.constant dense<0.000000e+00> : vector<128x128xf32>
    %20 = tpu.matmul %18, %15, %cst_20 {dimension_numbers = #tpu.dot_dimension_numbers<[1], [0], [0], [1], [0, 0, 1, 1], [], []>} : vector<128x128xf32>, vector<128x128xf32>, vector<128x128xf32> -> vector<128x128xf32>
    %21 = arith.addf %19, %20 : vector<128x128xf32>
    %22 = vector.broadcast %16 : vector<1x128xf32> to vector<128x128xf32>
    %23 = arith.addf %21, %22 : vector<128x128xf32>
    %cst_21 = arith.constant 0.000000e+00 : f32
    %24 = vector.broadcast %cst_21 : f32 to vector<128x128xf32>
    %25 = arith.maximumf %23, %24 : vector<128x128xf32>
    %c0_22 = arith.constant 0 : index
    %c0_23 = arith.constant 0 : index
    %26 = vector.load %arg9[%c0_22, %c0_23] : memref<128x128xf32, #tpu.memory_space<vmem>>, vector<128x128xf32>
    %c0_24 = arith.constant 0 : index
    %c0_25 = arith.constant 0 : index
    %27 = vector.load %arg10[%c0_24, %c0_25] : memref<128x128xf32, #tpu.memory_space<vmem>>, vector<128x128xf32>
    %c0_26 = arith.constant 0 : index
    %c0_27 = arith.constant 0 : index
    %28 = vector.load %arg11[%c0_26, %c0_27] : memref<1x128xf32, #tpu.memory_space<vmem>>, vector<1x128xf32>
    %29 = arith.truncf %25 : vector<128x128xf32> to vector<128x128xbf16>
    %cst_28 = arith.constant dense<0.000000e+00> : vector<128x128xf32>
    %30 = tpu.matmul %0, %29, %cst_28 {dimension_numbers = #tpu.dot_dimension_numbers<[1], [0], [0], [1], [0, 0, 1, 1], [], []>} : vector<128x128xbf16>, vector<128x128xbf16>, vector<128x128xf32> -> vector<128x128xf32>
    %cst_29 = arith.constant dense<0.000000e+00> : vector<128x128xf32>
    %31 = tpu.matmul %25, %26, %cst_29 {dimension_numbers = #tpu.dot_dimension_numbers<[1], [0], [0], [1], [0, 0, 1, 1], [], []>} : vector<128x128xf32>, vector<128x128xf32>, vector<128x128xf32> -> vector<128x128xf32>
    %cst_30 = arith.constant dense<0.000000e+00> : vector<128x128xf32>
    %32 = tpu.matmul %30, %27, %cst_30 {dimension_numbers = #tpu.dot_dimension_numbers<[1], [0], [0], [1], [0, 0, 1, 1], [], []>} : vector<128x128xf32>, vector<128x128xf32>, vector<128x128xf32> -> vector<128x128xf32>
    %33 = arith.addf %31, %32 : vector<128x128xf32>
    %34 = vector.broadcast %28 : vector<1x128xf32> to vector<128x128xf32>
    %35 = arith.addf %33, %34 : vector<128x128xf32>
    %36 = tpu.iota {dimensions = array<i32: 1>} : vector<128x128xi32>
    %c8_i32 = arith.constant 8 : i32
    %37 = vector.broadcast %c8_i32 : i32 to vector<128x128xi32>
    %38 = arith.cmpi slt, %36, %37 : vector<128x128xi32>
    %cst_31 = arith.constant -1.000000e+30 : f32
    %39 = vector.broadcast %cst_31 : f32 to vector<128x128xf32>
    %40 = arith.select %38, %35, %39 : vector<128x128xi1>, vector<128x128xf32>
    %cst_32 = arith.constant dense<0xFF800000> : vector<128xf32>
    %41 = vector.multi_reduction <maximumf>, %40, %cst_32 [1] : vector<128x128xf32> to vector<128xf32>
    %42 = vector.shape_cast %41 : vector<128xf32> to vector<128x1xf32>
    %43 = vector.broadcast %42 : vector<128x1xf32> to vector<128x128xf32>
    %44 = arith.subf %40, %43 : vector<128x128xf32>
    %45 = math.exp %44 : vector<128x128xf32>
    %cst_33 = arith.constant dense<0.000000e+00> : vector<128xf32>
    %46 = vector.multi_reduction <add>, %45, %cst_33 [1] : vector<128x128xf32> to vector<128xf32>
    %47 = vector.shape_cast %46 : vector<128xf32> to vector<128x1xf32>
    %48 = math.log %47 : vector<128x1xf32>
    %49 = vector.broadcast %48 : vector<128x1xf32> to vector<128x128xf32>
    %50 = arith.subf %44, %49 : vector<128x128xf32>
    %c0_34 = arith.constant 0 : index
    %c0_35 = arith.constant 0 : index
    %51 = vector.load %arg12[%c0_34, %c0_35] : memref<128x128xf32, #tpu.memory_space<vmem>>, vector<128x128xf32>
    tpu.vector_store %arg12[%c0_34, %c0_35], %50 {strides = array<i32>} : memref<128x128xf32, #tpu.memory_space<vmem>>, vector<128x128xf32>,
    return
  }
  func.func @transform_0(%arg0: i32) -> (i32, i32) {
    %c0_i32 = arith.constant 0 : i32
    %c0_i32_0 = arith.constant 0 : i32
    %c0_i32_1 = arith.constant 0 : i32
    return %c0_i32, %c0_i32_0 : i32, i32
  }
  func.func @transform_1(%arg0: i32) -> (i32, i32) {
    %c0_i32 = arith.constant 0 : i32
    %c0_i32_0 = arith.constant 0 : i32
    %c0_i32_1 = arith.constant 0 : i32
    return %c0_i32, %c0_i32_0 : i32, i32
  }
  func.func @transform_2(%arg0: i32) -> (i32, i32) {
    %c0_i32 = arith.constant 0 : i32
    %c0_i32_0 = arith.constant 0 : i32
    %c0_i32_1 = arith.constant 0 : i32
    return %c0_i32, %c0_i32_0 : i32, i32
  }
  func.func @transform_3(%arg0: i32) -> (i32, i32) {
    %c0_i32 = arith.constant 0 : i32
    %c0_i32_0 = arith.constant 0 : i32
    %c0_i32_1 = arith.constant 0 : i32
    return %c0_i32, %c0_i32_0 : i32, i32
  }
  func.func @transform_4(%arg0: i32) -> (i32, i32) {
    %c0_i32 = arith.constant 0 : i32
    %c0_i32_0 = arith.constant 0 : i32
    %c0_i32_1 = arith.constant 0 : i32
    return %c0_i32, %c0_i32_0 : i32, i32
  }
  func.func @transform_5(%arg0: i32) -> (i32, i32) {
    %c0_i32 = arith.constant 0 : i32
    %c0_i32_0 = arith.constant 0 : i32
    %c0_i32_1 = arith.constant 0 : i32
    return %c0_i32, %c0_i32_0 : i32, i32
  }
  func.func @transform_6(%arg0: i32) -> (i32, i32) {
    %c0_i32 = arith.constant 0 : i32
    %c0_i32_0 = arith.constant 0 : i32
    %c0_i32_1 = arith.constant 0 : i32
    return %c0_i32, %c0_i32_0 : i32, i32
  }
  func.func @transform_7(%arg0: i32) -> (i32, i32) {
    %c0_i32 = arith.constant 0 : i32
    %c0_i32_0 = arith.constant 0 : i32
    %c0_i32_1 = arith.constant 0 : i32
    return %c0_i32, %c0_i32_0 : i32, i32
  }
  func.func @transform_8(%arg0: i32) -> (i32, i32) {
    %c0_i32 = arith.constant 0 : i32
    %c0_i32_0 = arith.constant 0 : i32
    %c0_i32_1 = arith.constant 0 : i32
    return %c0_i32, %c0_i32_0 : i32, i32
  }
  func.func @transform_9(%arg0: i32) -> (i32, i32) {
    %c0_i32 = arith.constant 0 : i32
    %c0_i32_0 = arith.constant 0 : i32
    %c0_i32_1 = arith.constant 0 : i32
    return %c0_i32, %c0_i32_0 : i32, i32
  }
  func.func @transform_10(%arg0: i32) -> (i32, i32) {
    %c0_i32 = arith.constant 0 : i32
    %c0_i32_0 = arith.constant 0 : i32
    %c0_i32_1 = arith.constant 0 : i32
    return %c0_i32, %c0_i32_0 : i32, i32
  }
  func.func @transform_11(%arg0: i32) -> (i32, i32) {
    %c0_i32 = arith.constant 0 : i32
    %c0_i32_0 = arith.constant 0 : i32
    %c0_i32_1 = arith.constant 0 : i32
    return %c0_i32, %c0_i32_0 : i32, i32
  }
}

</mosaic_0001>

<llo_original>
// kernel: tpu_custom_call.1
$region0: #{tpu_custom_call.1}
  #allocation0 [shape = 'u32[]', space=smem, size = 0x4, offset = 0x4, fixed_abs, tag = 'smem constant byte address 0x4 - core index']
  #allocation1 [shape = 'u32[144,128]{1,0:T(1,128)}', space=vmem, size = 0x12000, scoped, tag = 'internal scratch']
  %s0 = inlined_call_operand.hbm [shape: bf16[128,128], index: 0, kind: input, shape index: {}]
  %s1 = inlined_call_operand.hbm [shape: f32[128,128], index: 1, kind: input, shape index: {}]
  %s2 = inlined_call_operand.hbm [shape: f32[128,128], index: 2, kind: input, shape index: {}]
  %s3 = inlined_call_operand.hbm [shape: f32[128,128], index: 3, kind: input, shape index: {}]
  %s4 = inlined_call_operand.vmem [shape: f32[1,128], index: 4, kind: input, shape index: {}]
  %s5 = inlined_call_operand.hbm [shape: f32[128,128], index: 5, kind: input, shape index: {}]
  %s6 = inlined_call_operand.hbm [shape: f32[128,128], index: 6, kind: input, shape index: {}]
  %s7 = inlined_call_operand.vmem [shape: f32[1,128], index: 7, kind: input, shape index: {}]
  %s8 = inlined_call_operand.hbm [shape: f32[128,128], index: 8, kind: input, shape index: {}]
  %s9 = inlined_call_operand.hbm [shape: f32[128,128], index: 9, kind: input, shape index: {}]
  %s10 = inlined_call_operand.vmem [shape: f32[1,128], index: 10, kind: input, shape index: {}]
  %s11 = inlined_call_operand.hbm [shape: f32[128,128], index: 11, kind: output, shape index: {}]
  %s12 = sld [smem:[#allocation0]]
  $region86: #{tpu_custom_call.1} parent=0
    _
  %s14 = ssub.s32 1, %s12
  %s15 = scalar_select 0, %s14, %s12
  $region1: #{tpu_custom_call.1} parent=0
    #allocation2 [shape = 'u8[32768]{0}', space=vmem, size = 0x8000, scoped, tag = 'input window, operand 0, single buffered']
    #allocation3 [shape = 's32[1]{0}', space=sflag, size = 0x4, scoped, tag = 'scoped memory for tpu_custom_call.1']
    #allocation4 [shape = 's32[1]{0}', space=sflag, size = 0x4, scoped, tag = 'scoped memory for tpu_custom_call.1']
    #allocation5 [shape = 'u8[65536]{0}', space=vmem, size = 0x10000, scoped, tag = 'input window, operand 1, single buffered']
    #allocation6 [shape = 's32[1]{0}', space=sflag, size = 0x4, scoped, tag = 'scoped memory for tpu_custom_call.1']
    #allocation7 [shape = 'u8[65536]{0}', space=vmem, size = 0x10000, scoped, tag = 'input window, operand 2, single buffered']
    #allocation8 [shape = 'u8[65536]{0}', space=vmem, size = 0x10000, scoped, tag = 'input window, operand 3, single buffered']
    #allocation9 [shape = 's32[1]{0}', space=sflag, size = 0x4, scoped, tag = 'scoped memory for tpu_custom_call.1']
    #allocation10 [shape = 'u8[65536]{0}', space=vmem, size = 0x10000, scoped, tag = 'input window, operand 5, single buffered']
    #allocation11 [shape = 'u8[65536]{0}', space=vmem, size = 0x10000, scoped, tag = 'input window, operand 6, single buffered']
    #allocation12 [shape = 's32[1]{0}', space=sflag, size = 0x4, scoped, tag = 'scoped memory for tpu_custom_call.1']
    #allocation13 [shape = 'u8[65536]{0}', space=vmem, size = 0x10000, scoped, tag = 'input window, operand 8, single buffered']
    #allocation14 [shape = 'u8[65536]{0}', space=vmem, size = 0x10000, scoped, tag = 'input window, operand 9, single buffered']
    #allocation15 [shape = 's32[1]{0}', space=sflag, size = 0x4, scoped, tag = 'scoped memory for tpu_custom_call.1']
    #allocation16 [shape = 'u8[65536]{0}', space=vmem, size = 0x10000, scoped, tag = 'output window, operand 0, single buffered']
    %16 = vsyncpa [#allocation3], 0
    %17 = vsyncpa [#allocation6], 0
    %18 = vsyncpa [#allocation9], 0
    %19 = vsyncpa [#allocation12], 0
    %20 = vsyncpa [#allocation15], 0
    %21 = vsyncpa [#allocation4], 0
    // Predicated region
    $region2: #{tpu_custom_call.1} parent=1 // pred_check
      _
    $region3: #{tpu_custom_call.1} parent=1 // pred_check_branch
      %23 = sbr.rel (0) target = $region5
    $region4: #{tpu_custom_call.1} parent=1 // pred_region
      %s25 = ssub.s32 1024, 1024
      %26 = vsyncadd [#allocation3], %s25
      %s27 = sshll.u32 [#allocation2], 4
      %s28 = int_to_ptr.vmem [resolvable:$true] %s27
      %33 = dma.hbm_to_vmem [thread:$0]  %s0, 1024, %s28, [#allocation3], 64, 64, 4
    $region5: #{tpu_custom_call.1} parent=1 // pred_fallthru
      _
    // Predicated region
    $region6: #{tpu_custom_call.1} parent=1 // pred_check
      _
    $region7: #{tpu_custom_call.1} parent=1 // pred_check_branch
      %35 = sbr.rel (0) target = $region9
    $region8: #{tpu_custom_call.1} parent=1 // pred_region
      %s37 = ssub.s32 2048, 2048
      %38 = vsyncadd [#allocation6], %s37
      %s39 = sshll.u32 [#allocation5], 4
      %s40 = int_to_ptr.vmem [resolvable:$true] %s39
      %45 = dma.hbm_to_vmem [thread:$0]  %s1, 2048, %s40, [#allocation6], 128, 128, 8
    $region9: #{tpu_custom_call.1} parent=1 // pred_fallthru
      _
    // Predicated region
    $region10: #{tpu_custom_call.1} parent=1 // pred_check
      _
    $region11: #{tpu_custom_call.1} parent=1 // pred_check_branch
      %47 = sbr.rel (0) target = $region13
    $region12: #{tpu_custom_call.1} parent=1 // pred_region
      %s49 = ssub.s32 2048, 2048
      %50 = vsyncadd [#allocation6], %s49
      %s51 = sshll.u32 [#allocation7], 4
      %s52 = int_to_ptr.vmem [resolvable:$true] %s51
      %57 = dma.hbm_to_vmem [thread:$0]  %s2, 2048, %s52, [#allocation6], 128, 128, 8
    $region13: #{tpu_custom_call.1} parent=1 // pred_fallthru
      _
    // Predicated region
    $region14: #{tpu_custom_call.1} parent=1 // pred_check
      _
    $region15: #{tpu_custom_call.1} parent=1 // pred_check_branch
      %59 = sbr.rel (0) target = $region17
    $region16: #{tpu_custom_call.1} parent=1 // pred_region
      %s61 = ssub.s32 2048, 2048
      %62 = vsyncadd [#allocation9], %s61
      %s63 = sshll.u32 [#allocation8], 4
      %s64 = int_to_ptr.vmem [resolvable:$true] %s63
      %69 = dma.hbm_to_vmem [thread:$0]  %s3, 2048, %s64, [#allocation9], 128, 128, 8
    $region17: #{tpu_custom_call.1} parent=1 // pred_fallthru
      _
    // Predicated region
    $region18: #{tpu_custom_call.1} parent=1 // pred_check
      _
    $region19: #{tpu_custom_call.1} parent=1 // pred_check_branch
      %71 = sbr.rel (0) target = $region21
    $region20: #{tpu_custom_call.1} parent=1 // pred_region
      _
    $region21: #{tpu_custom_call.1} parent=1 // pred_fallthru
      _
    // Predicated region
    $region22: #{tpu_custom_call.1} parent=1 // pred_check
      _
    $region23: #{tpu_custom_call.1} parent=1 // pred_check_branch
      %73 = sbr.rel (0) target = $region25
    $region24: #{tpu_custom_call.1} parent=1 // pred_region
      %s75 = ssub.s32 2048, 2048
      %76 = vsyncadd [#allocation9], %s75
      %s77 = sshll.u32 [#allocation10], 4
      %s78 = int_to_ptr.vmem [resolvable:$true] %s77
      %83 = dma.hbm_to_vmem [thread:$0]  %s5, 2048, %s78, [#allocation9], 128, 128, 8
    $region25: #{tpu_custom_call.1} parent=1 // pred_fallthru
      _
    // Predicated region
    $region26: #{tpu_custom_call.1} parent=1 // pred_check
      _
    $region27: #{tpu_custom_call.1} parent=1 // pred_check_branch
      %85 = sbr.rel (0) target = $region29
    $region28: #{tpu_custom_call.1} parent=1 // pred_region
      %s87 = ssub.s32 2048, 2048
      %88 = vsyncadd [#allocation12], %s87
      %s89 = sshll.u32 [#allocation11], 4
      %s90 = int_to_ptr.vmem [resolvable:$true] %s89
      %95 = dma.hbm_to_vmem [thread:$0]  %s6, 2048, %s90, [#allocation12], 128, 128, 8
    $region29: #{tpu_custom_call.1} parent=1 // pred_fallthru
      _
    // Predicated region
    $region30: #{tpu_custom_call.1} parent=1 // pred_check
      _
    $region31: #{tpu_custom_call.1} parent=1 // pred_check_branch
      %97 = sbr.rel (0) target = $region33
    $region32: #{tpu_custom_call.1} parent=1 // pred_region
      _
    $region33: #{tpu_custom_call.1} parent=1 // pred_fallthru
      _
    // Predicated region
    $region34: #{tpu_custom_call.1} parent=1 // pred_check
      _
    $region35: #{tpu_custom_call.1} parent=1 // pred_check_branch
      %99 = sbr.rel (0) target = $region37
    $region36: #{tpu_custom_call.1} parent=1 // pred_region
      %s101 = ssub.s32 2048, 2048
      %102 = vsyncadd [#allocation12], %s101
      %s103 = sshll.u32 [#allocation13], 4
      %s104 = int_to_ptr.vmem [resolvable:$true] %s103
      %109 = dma.hbm_to_vmem [thread:$0]  %s8, 2048, %s104, [#allocation12], 128, 128, 8
    $region37: #{tpu_custom_call.1} parent=1 // pred_fallthru
      _
    // Predicated region
    $region38: #{tpu_custom_call.1} parent=1 // pred_check
      _
    $region39: #{tpu_custom_call.1} parent=1 // pred_check_branch
      %111 = sbr.rel (0) target = $region41
    $region40: #{tpu_custom_call.1} parent=1 // pred_region
      %s113 = ssub.s32 2048, 2048
      %114 = vsyncadd [#allocation15], %s113
      %s115 = sshll.u32 [#allocation14], 4
      %s116 = int_to_ptr.vmem [resolvable:$true] %s115
      %121 = dma.hbm_to_vmem [thread:$0]  %s9, 2048, %s116, [#allocation15], 128, 128, 8
    $region41: #{tpu_custom_call.1} parent=1 // pred_fallthru
      _
    // Predicated region
    $region42: #{tpu_custom_call.1} parent=1 // pred_check
      _
    $region43: #{tpu_custom_call.1} parent=1 // pred_check_branch
      %123 = sbr.rel (0) target = $region45
    $region44: #{tpu_custom_call.1} parent=1 // pred_region
      _
    $region45: #{tpu_custom_call.1} parent=1 // pred_fallthru
      _
    // Predicated region
    $region46: #{tpu_custom_call.1} parent=1 // pred_check
      _
    $region47: #{tpu_custom_call.1} parent=1 // pred_check_branch
      %125 = sbr.rel (0) target = $region49
    $region48: #{tpu_custom_call.1} parent=1 // pred_region
      %126 = dma.done [#allocation3], 1024
    $region49: #{tpu_custom_call.1} parent=1 // pred_fallthru
      _
    // Predicated region
    $region50: #{tpu_custom_call.1} parent=1 // pred_check
      _
    $region51: #{tpu_custom_call.1} parent=1 // pred_check_branch
      %128 = sbr.rel (0) target = $region53
    $region52: #{tpu_custom_call.1} parent=1 // pred_region
      %129 = dma.done [#allocation6], 2048
    $region53: #{tpu_custom_call.1} parent=1 // pred_fallthru
      _
    // Predicated region
    $region54: #{tpu_custom_call.1} parent=1 // pred_check
      _
    $region55: #{tpu_custom_call.1} parent=1 // pred_check_branch
      %131 = sbr.rel (0) target = $region57
    $region56: #{tpu_custom_call.1} parent=1 // pred_region
      %132 = dma.done [#allocation6], 2048
    $region57: #{tpu_custom_call.1} parent=1 // pred_fallthru
      _
    // Predicated region
    $region58: #{tpu_custom_call.1} parent=1 // pred_check
      _
    $region59: #{tpu_custom_call.1} parent=1 // pred_check_branch
      %134 = sbr.rel (0) target = $region61
    $region60: #{tpu_custom_call.1} parent=1 // pred_region
      %135 = dma.done [#allocation9], 2048
    $region61: #{tpu_custom_call.1} parent=1 // pred_fallthru
      _
    // Predicated region
    $region62: #{tpu_custom_call.1} parent=1 // pred_check
      _
    $region63: #{tpu_custom_call.1} parent=1 // pred_check_branch
      %137 = sbr.rel (0) target = $region65
    $region64: #{tpu_custom_call.1} parent=1 // pred_region
      %138 = dma.done [#allocation9], 2048
    $region65: #{tpu_custom_call.1} parent=1 // pred_fallthru
      _
    // Predicated region
    $region66: #{tpu_custom_call.1} parent=1 // pred_check
      _
    $region67: #{tpu_custom_call.1} parent=1 // pred_check_branch
      %140 = sbr.rel (0) target = $region69
    $region68: #{tpu_custom_call.1} parent=1 // pred_region
      %141 = dma.done [#allocation12], 2048
    $region69: #{tpu_custom_call.1} parent=1 // pred_fallthru
      _
    // Predicated region
    $region70: #{tpu_custom_call.1} parent=1 // pred_check
      _
    $region71: #{tpu_custom_call.1} parent=1 // pred_check_branch
      %143 = sbr.rel (0) target = $region73
    $region72: #{tpu_custom_call.1} parent=1 // pred_region
      %144 = dma.done [#allocation12], 2048
    $region73: #{tpu_custom_call.1} parent=1 // pred_fallthru
      _
    // Predicated region
    $region74: #{tpu_custom_call.1} parent=1 // pred_check
      _
    $region75: #{tpu_custom_call.1} parent=1 // pred_check_branch
      %146 = sbr.rel (0) target = $region77
    $region76: #{tpu_custom_call.1} parent=1 // pred_region
      %147 = dma.done [#allocation15], 2048
    $region77: #{tpu_custom_call.1} parent=1 // pred_fallthru
      _
    %v149 = vld [vmem:[#allocation2] sm:$0xf]
    %v150 = vld [vmem:[#allocation2 + $0x4] sm:$0xf]
    %v151 = vld [vmem:[#allocation2 + $0x8] sm:$0xf]
    %v152 = vld [vmem:[#allocation2 + $0xc] sm:$0xf]
    %v153 = vld [vmem:[#allocation2 + $0x10] sm:$0xf]
    %v154 = vld [vmem:[#allocation2 + $0x14] sm:$0xf]
    %v155 = vld [vmem:[#allocation2 + $0x18] sm:$0xf]
    %v156 = vld [vmem:[#allocation2 + $0x1c] sm:$0xf]
    %v157 = vld [vmem:[#allocation2 + $0x20] sm:$0xf]
    %v158 = vld [vmem:[#allocation2 + $0x24] sm:$0xf]
    %v159 = vld [vmem:[#allocation2 + $0x28] sm:$0xf]
    %v160 = vld [vmem:[#allocation2 + $0x2c] sm:$0xf]
    %v161 = vld [vmem:[#allocation2 + $0x30] sm:$0xf]
    %v162 = vld [vmem:[#allocation2 + $0x34] sm:$0xf]
    %v163 = vld [vmem:[#allocation2 + $0x38] sm:$0xf]
    %v164 = vld [vmem:[#allocation2 + $0x3c] sm:$0xf]
    %v165 = vld [vmem:[#allocation5] sm:$0xff]
    %v166 = vld [vmem:[#allocation5 + $0x8] sm:$0xff]
    %v167 = vld [vmem:[#allocation5 + $0x10] sm:$0xff]
    %v168 = vld [vmem:[#allocation5 + $0x18] sm:$0xff]
    %v169 = vld [vmem:[#allocation5 + $0x20] sm:$0xff]
    %v170 = vld [vmem:[#allocation5 + $0x28] sm:$0xff]
    %v171 = vld [vmem:[#allocation5 + $0x30] sm:$0xff]
    %v172 = vld [vmem:[#allocation5 + $0x38] sm:$0xff]
    %v173 = vld [vmem:[#allocation5 + $0x40] sm:$0xff]
    %v174 = vld [vmem:[#allocation5 + $0x48] sm:$0xff]
    %v175 = vld [vmem:[#allocation5 + $0x50] sm:$0xff]
    %v176 = vld [vmem:[#allocation5 + $0x58] sm:$0xff]
    %v177 = vld [vmem:[#allocation5 + $0x60] sm:$0xff]
    %v178 = vld [vmem:[#allocation5 + $0x68] sm:$0xff]
    %v179 = vld [vmem:[#allocation5 + $0x70] sm:$0xff]
    %v180 = vld [vmem:[#allocation5 + $0x78] sm:$0xff]
    %v181 = vld [vmem:[#allocation7] sm:$0xff]
    %v182 = vld [vmem:[#allocation7 + $0x8] sm:$0xff]
    %v183 = vld [vmem:[#allocation7 + $0x10] sm:$0xff]
    %v184 = vld [vmem:[#allocation7 + $0x18] sm:$0xff]
    %v185 = vld [vmem:[#allocation7 + $0x20] sm:$0xff]
    %v186 = vld [vmem:[#allocation7 + $0x28] sm:$0xff]
    %v187 = vld [vmem:[#allocation7 + $0x30] sm:$0xff]
    %v188 = vld [vmem:[#allocation7 + $0x38] sm:$0xff]
    %v189 = vld [vmem:[#allocation7 + $0x40] sm:$0xff]
    %v190 = vld [vmem:[#allocation7 + $0x48] sm:$0xff]
    %v191 = vld [vmem:[#allocation7 + $0x50] sm:$0xff]
    %v192 = vld [vmem:[#allocation7 + $0x58] sm:$0xff]
    %v193 = vld [vmem:[#allocation7 + $0x60] sm:$0xff]
    %v194 = vld [vmem:[#allocation7 + $0x68] sm:$0xff]
    %v195 = vld [vmem:[#allocation7 + $0x70] sm:$0xff]
    %v196 = vld [vmem:[#allocation7 + $0x78] sm:$0xff]
    %v197 = vld [vmem:[#allocation8] sm:$0xff]
    %v198 = vld [vmem:[#allocation8 + $0x8] sm:$0xff]
    %v199 = vld [vmem:[#allocation8 + $0x10] sm:$0xff]
    %v200 = vld [vmem:[#allocation8 + $0x18] sm:$0xff]
    %v201 = vld [vmem:[#allocation8 + $0x20] sm:$0xff]
    %v202 = vld [vmem:[#allocation8 + $0x28] sm:$0xff]
    %v203 = vld [vmem:[#allocation8 + $0x30] sm:$0xff]
    %v204 = vld [vmem:[#allocation8 + $0x38] sm:$0xff]
    %v205 = vld [vmem:[#allocation8 + $0x40] sm:$0xff]
    %v206 = vld [vmem:[#allocation8 + $0x48] sm:$0xff]
    %v207 = vld [vmem:[#allocation8 + $0x50] sm:$0xff]
    %v208 = vld [vmem:[#allocation8 + $0x58] sm:$0xff]
    %v209 = vld [vmem:[#allocation8 + $0x60] sm:$0xff]
    %v210 = vld [vmem:[#allocation8 + $0x68] sm:$0xff]
    %v211 = vld [vmem:[#allocation8 + $0x70] sm:$0xff]
    %v212 = vld [vmem:[#allocation8 + $0x78] sm:$0xff]
    %v213 = vld [vmem:[%s4] sm:$0x1]
    %v214 = vpack.c.bf16 %v166, %v165
    %v215 = vpack.c.bf16 %v168, %v167
    %v216 = vpack.c.bf16 %v170, %v169
    %v217 = vpack.c.bf16 %v172, %v171
    %v218 = vpack.c.bf16 %v174, %v173
    %v219 = vpack.c.bf16 %v176, %v175
    %v220 = vpack.c.bf16 %v178, %v177
    %v221 = vpack.c.bf16 %v180, %v179
    %v238 = vunpack.c.l.b16 %v149
    %v239 = vunpack.c.l.b16 %v150
    %v240 = vunpack.c.l.b16 %v151
    %v241 = vunpack.c.l.b16 %v152
    %v242 = vunpack.c.l.b16 %v153
    %v243 = vunpack.c.l.b16 %v154
    %v244 = vunpack.c.l.b16 %v155
    %v245 = vunpack.c.l.b16 %v156
    %v246 = vunpack.c.l.b16 %v157
    %v247 = vunpack.c.l.b16 %v158
    %v248 = vunpack.c.l.b16 %v159
    %v249 = vunpack.c.l.b16 %v160
    %v250 = vunpack.c.l.b16 %v161
    %v251 = vunpack.c.l.b16 %v162
    %v252 = vunpack.c.l.b16 %v163
    %v253 = vunpack.c.l.b16 %v164
    %v254 = vpack.c.b16 %v239, %v238
    %v255 = vpack.c.b16 %v241, %v240
    %v256 = vpack.c.b16 %v243, %v242
    %v257 = vpack.c.b16 %v245, %v244
    %v258 = vpack.c.b16 %v247, %v246
    %v259 = vpack.c.b16 %v249, %v248
    %v260 = vpack.c.b16 %v251, %v250
    %v261 = vpack.c.b16 %v253, %v252
    %270 = vmatprep.subr.bf16.mxu0 0
    %271 = vmatpush1.bf16.msra.mxu0 %v221
    %272 = vmatprep.subr.bf16.mxu0 0
    %273 = vmatpush1.bf16.msra.mxu0 %v220
    %274 = vmatprep.subr.bf16.mxu0 0
    %275 = vmatpush1.bf16.msra.mxu0 %v219
    %276 = vmatprep.subr.bf16.mxu0 0
    %277 = vmatpush1.bf16.msra.mxu0 %v218
    %278 = vmatprep.subr.bf16.mxu0 0
    %279 = vmatpush1.bf16.msra.mxu0 %v217
    %280 = vmatprep.subr.bf16.mxu0 0
    %281 = vmatpush1.bf16.msra.mxu0 %v216
    %282 = vmatprep.subr.bf16.mxu0 0
    %283 = vmatpush1.bf16.msra.mxu0 %v215
    %284 = vmatprep.subr.bf16.mxu0 0
    %285 = vmatpush1.bf16.msra.mxu0 %v214
    %286 = vmatprep.subr.bf16.mxu0 0
    %287 = vmatpush2.bf16.msra.mxu0 0
    %288 = vmatprep.subr.bf16.mxu0 0
    %289 = vmatpush2.bf16.msra.mxu0 0
    %290 = vmatprep.subr.bf16.mxu0 0
    %291 = vmatpush2.bf16.msra.mxu0 0
    %292 = vmatprep.subr.bf16.mxu0 0
    %293 = vmatpush2.bf16.msra.mxu0 0
    %294 = vmatprep.subr.bf16.mxu0 0
    %295 = vmatpush2.bf16.msra.mxu0 0
    %296 = vmatprep.subr.bf16.mxu0 0
    %297 = vmatpush2.bf16.msra.mxu0 0
    %298 = vmatprep.subr.bf16.mxu0 0
    %299 = vmatpush2.bf16.msra.mxu0 0
    %300 = vmatprep.subr.bf16.mxu0 0
    %301 = vmatpush2.bf16.msra.mxu0 0
    %302 = vmatprep.mubr.bf16.mxu0 0
    %303 = vmatmul.mubr.bf16.gmra.mxu0 %v254
    %v304 = vpop.f32.mrf.mxu0
    %v305 = vadd.f32 0.0, %v304
    %v306 = vpop.f32.mrf.mxu0
    %v307 = vpop.f32.mrf.mxu0
    %v308 = vadd.f32 0.0, %v307
    %v309 = vpop.f32.mrf.mxu0
    %310 = vmatprep.mubr.bf16.mxu0 0
    %311 = vmatmul.mubr.bf16.gmra.mxu0 %v255
    %v312 = vpop.f32.mrf.mxu0
    %v313 = vadd.f32 0.0, %v312
    %v314 = vpop.f32.mrf.mxu0
    %v315 = vpop.f32.mrf.mxu0
    %v316 = vadd.f32 0.0, %v315
    %v317 = vpop.f32.mrf.mxu0
    %318 = vmatprep.mubr.bf16.mxu0 0
    %319 = vmatmul.mubr.bf16.gmra.mxu0 %v256
    %v320 = vpop.f32.mrf.mxu0
    %v321 = vadd.f32 0.0, %v320
    %v322 = vpop.f32.mrf.mxu0
    %v323 = vpop.f32.mrf.mxu0
    %v324 = vadd.f32 0.0, %v323
    %v325 = vpop.f32.mrf.mxu0
    %326 = vmatprep.mubr.bf16.mxu0 0
    %327 = vmatmul.mubr.bf16.gmra.mxu0 %v257
    %v328 = vpop.f32.mrf.mxu0
    %v329 = vadd.f32 0.0, %v328
    %v330 = vpop.f32.mrf.mxu0
    %v331 = vpop.f32.mrf.mxu0
    %v332 = vadd.f32 0.0, %v331
    %v333 = vpop.f32.mrf.mxu0
    %334 = vmatprep.mubr.bf16.mxu0 0
    %335 = vmatmul.mubr.bf16.gmra.mxu0 %v258
    %v336 = vpop.f32.mrf.mxu0
    %v337 = vadd.f32 0.0, %v336
    %v338 = vpop.f32.mrf.mxu0
    %v339 = vpop.f32.mrf.mxu0
    %v340 = vadd.f32 0.0, %v339
    %v341 = vpop.f32.mrf.mxu0
    %342 = vmatprep.mubr.bf16.mxu0 0
    %343 = vmatmul.mubr.bf16.gmra.mxu0 %v259
    %v344 = vpop.f32.mrf.mxu0
    %v345 = vadd.f32 0.0, %v344
    %v346 = vpop.f32.mrf.mxu0
    %v347 = vpop.f32.mrf.mxu0
    %v348 = vadd.f32 0.0, %v347
    %v349 = vpop.f32.mrf.mxu0
    %350 = vmatprep.mubr.bf16.mxu0 0
    %351 = vmatmul.mubr.bf16.gmra.mxu0 %v260
    %v352 = vpop.f32.mrf.mxu0
    %v353 = vadd.f32 0.0, %v352
    %v354 = vpop.f32.mrf.mxu0
    %v355 = vpop.f32.mrf.mxu0
    %v356 = vadd.f32 0.0, %v355
    %v357 = vpop.f32.mrf.mxu0
    %358 = vmatprep.mubr.bf16.mxu0 0
    %359 = vmatmul.mubr.bf16.gmra.mxu0 %v261
    %v360 = vpop.f32.mrf.mxu0
    %v361 = vadd.f32 0.0, %v360
    %v362 = vpop.f32.mrf.mxu0
    %v363 = vpop.f32.mrf.mxu0
    %v364 = vadd.f32 0.0, %v363
    %v365 = vpop.f32.mrf.mxu0
    %366 = vdwg.mxu0
    %367 = vmatprep.subr.mxu0 0.0
    %368 = vmatpush1.msra.mxu0 %v212
    %369 = vmatprep.subr.mxu0 0.0
    %370 = vmatpush1.msra.mxu0 %v211
    %371 = vmatprep.subr.mxu0 0.0
    %372 = vmatpush1.msra.mxu0 %v210
    %373 = vmatprep.subr.mxu0 0.0
    %374 = vmatpush1.msra.mxu0 %v209
    %375 = vmatprep.subr.mxu0 0.0
    %376 = vmatpush1.msra.mxu0 %v208
    %377 = vmatprep.subr.mxu0 0.0
    %378 = vmatpush1.msra.mxu0 %v207
    %379 = vmatprep.subr.mxu0 0.0
    %380 = vmatpush1.msra.mxu0 %v206
    %381 = vmatprep.subr.mxu0 0.0
    %382 = vmatpush1.msra.mxu0 %v205
    %383 = vmatprep.subr.mxu0 0.0
    %384 = vmatpush1.msra.mxu0 %v204
    %385 = vmatprep.subr.mxu0 0.0
    %386 = vmatpush1.msra.mxu0 %v203
    %387 = vmatprep.subr.mxu0 0.0
    %388 = vmatpush1.msra.mxu0 %v202
    %389 = vmatprep.subr.mxu0 0.0
    %390 = vmatpush1.msra.mxu0 %v201
    %391 = vmatprep.subr.mxu0 0.0
    %392 = vmatpush1.msra.mxu0 %v200
    %393 = vmatprep.subr.mxu0 0.0
    %394 = vmatpush1.msra.mxu0 %v199
    %395 = vmatprep.subr.mxu0 0.0
    %396 = vmatpush1.msra.mxu0 %v198
    %397 = vmatprep.subr.mxu0 0.0
    %398 = vmatpush1.msra.mxu0 %v197
    %399 = vmatprep.subr.mxu0 0.0
    %400 = vmatpush2.msra.mxu0 0.0
    %401 = vmatprep.subr.mxu0 0.0
    %402 = vmatpush2.msra.mxu0 0.0
    %403 = vmatprep.subr.mxu0 0.0
    %404 = vmatpush2.msra.mxu0 0.0
    %405 = vmatprep.subr.mxu0 0.0
    %406 = vmatpush2.msra.mxu0 0.0
    %407 = vmatprep.subr.mxu0 0.0
    %408 = vmatpush2.msra.mxu0 0.0
    %409 = vmatprep.subr.mxu0 0.0
    %410 = vmatpush2.msra.mxu0 0.0
    %411 = vmatprep.subr.mxu0 0.0
    %412 = vmatpush2.msra.mxu0 0.0
    %413 = vmatprep.subr.mxu0 0.0
    %414 = vmatpush2.msra.mxu0 0.0
    %415 = vmatprep.subr.mxu0 0.0
    %416 = vmatpush2.msra.mxu0 0.0
    %417 = vmatprep.subr.mxu0 0.0
    %418 = vmatpush2.msra.mxu0 0.0
    %419 = vmatprep.subr.mxu0 0.0
    %420 = vmatpush2.msra.mxu0 0.0
    %421 = vmatprep.subr.mxu0 0.0
    %422 = vmatpush2.msra.mxu0 0.0
    %423 = vmatprep.subr.mxu0 0.0
    %424 = vmatpush2.msra.mxu0 0.0
    %425 = vmatprep.subr.mxu0 0.0
    %426 = vmatpush2.msra.mxu0 0.0
    %427 = vmatprep.subr.mxu0 0.0
    %428 = vmatpush2.msra.mxu0 0.0
    %429 = vmatprep.subr.mxu0 0.0
    %430 = vmatpush2.msra.mxu0 0.0
    %431 = vmatprep.mubr.f32.mxu0 0.0
    %432 = vmatmul.mubr.f32.gmra.mxu0 %v305
    %v433 = vpop.f32.mrf.mxu0
    %v434 = vadd.f32 0.0, %v433
    %v435 = vpop.f32.mrf.mxu0
    %436 = vmatprep.mubr.f32.mxu0 0.0
    %437 = vmatmul.mubr.f32.gmra.mxu0 %v308
    %v438 = vpop.f32.mrf.mxu0
    %v439 = vadd.f32 0.0, %v438
    %v440 = vpop.f32.mrf.mxu0
    %441 = vmatprep.mubr.f32.mxu0 0.0
    %442 = vmatmul.mubr.f32.gmra.mxu0 %v313
    %v443 = vpop.f32.mrf.mxu0
    %v444 = vadd.f32 0.0, %v443
    %v445 = vpop.f32.mrf.mxu0
    %446 = vmatprep.mubr.f32.mxu0 0.0
    %447 = vmatmul.mubr.f32.gmra.mxu0 %v316
    %v448 = vpop.f32.mrf.mxu0
    %v449 = vadd.f32 0.0, %v448
    %v450 = vpop.f32.mrf.mxu0
    %451 = vmatprep.mubr.f32.mxu0 0.0
    %452 = vmatmul.mubr.f32.gmra.mxu0 %v321
    %v453 = vpop.f32.mrf.mxu0
    %v454 = vadd.f32 0.0, %v453
    %v455 = vpop.f32.mrf.mxu0
    %456 = vmatprep.mubr.f32.mxu0 0.0
    %457 = vmatmul.mubr.f32.gmra.mxu0 %v324
    %v458 = vpop.f32.mrf.mxu0
    %v459 = vadd.f32 0.0, %v458
    %v460 = vpop.f32.mrf.mxu0
    %461 = vmatprep.mubr.f32.mxu0 0.0
    %462 = vmatmul.mubr.f32.gmra.mxu0 %v329
    %v463 = vpop.f32.mrf.mxu0
    %v464 = vadd.f32 0.0, %v463
    %v465 = vpop.f32.mrf.mxu0
    %466 = vmatprep.mubr.f32.mxu0 0.0
    %467 = vmatmul.mubr.f32.gmra.mxu0 %v332
    %v468 = vpop.f32.mrf.mxu0
    %v469 = vadd.f32 0.0, %v468
    %v470 = vpop.f32.mrf.mxu0
    %471 = vmatprep.mubr.f32.mxu0 0.0
    %472 = vmatmul.mubr.f32.gmra.mxu0 %v337
    %v473 = vpop.f32.mrf.mxu0
    %v474 = vadd.f32 0.0, %v473
    %v475 = vpop.f32.mrf.mxu0
    %476 = vmatprep.mubr.f32.mxu0 0.0
    %477 = vmatmul.mubr.f32.gmra.mxu0 %v340
    %v478 = vpop.f32.mrf.mxu0
    %v479 = vadd.f32 0.0, %v478
    %v480 = vpop.f32.mrf.mxu0
    %481 = vmatprep.mubr.f32.mxu0 0.0
    %482 = vmatmul.mubr.f32.gmra.mxu0 %v345
    %v483 = vpop.f32.mrf.mxu0
    %v484 = vadd.f32 0.0, %v483
    %v485 = vpop.f32.mrf.mxu0
    %486 = vmatprep.mubr.f32.mxu0 0.0
    %487 = vmatmul.mubr.f32.gmra.mxu0 %v348
    %v488 = vpop.f32.mrf.mxu0
    %v489 = vadd.f32 0.0, %v488
    %v490 = vpop.f32.mrf.mxu0
    %491 = vmatprep.mubr.f32.mxu0 0.0
    %492 = vmatmul.mubr.f32.gmra.mxu0 %v353
    %v493 = vpop.f32.mrf.mxu0
    %v494 = vadd.f32 0.0, %v493
    %v495 = vpop.f32.mrf.mxu0
    %496 = vmatprep.mubr.f32.mxu0 0.0
    %497 = vmatmul.mubr.f32.gmra.mxu0 %v356
    %v498 = vpop.f32.mrf.mxu0
    %v499 = vadd.f32 0.0, %v498
    %v500 = vpop.f32.mrf.mxu0
    %501 = vmatprep.mubr.f32.mxu0 0.0
    %502 = vmatmul.mubr.f32.gmra.mxu0 %v361
    %v503 = vpop.f32.mrf.mxu0
    %v504 = vadd.f32 0.0, %v503
    %v505 = vpop.f32.mrf.mxu0
    %506 = vmatprep.mubr.f32.mxu0 0.0
    %507 = vmatmul.mubr.f32.gmra.mxu0 %v364
    %v508 = vpop.f32.mrf.mxu0
    %v509 = vadd.f32 0.0, %v508
    %v510 = vpop.f32.mrf.mxu0
    %511 = vdwg.mxu0
    %512 = vmatprep.subr.mxu0 0.0
    %513 = vmatpush1.msra.mxu0 %v196
    %514 = vmatprep.subr.mxu0 0.0
    %515 = vmatpush1.msra.mxu0 %v195
    %516 = vmatprep.subr.mxu0 0.0
    %517 = vmatpush1.msra.mxu0 %v194
    %518 = vmatprep.subr.mxu0 0.0
    %519 = vmatpush1.msra.mxu0 %v193
    %520 = vmatprep.subr.mxu0 0.0
    %521 = vmatpush1.msra.mxu0 %v192
    %522 = vmatprep.subr.mxu0 0.0
    %523 = vmatpush1.msra.mxu0 %v191
    %524 = vmatprep.subr.mxu0 0.0
    %525 = vmatpush1.msra.mxu0 %v190
    %526 = vmatprep.subr.mxu0 0.0
    %527 = vmatpush1.msra.mxu0 %v189
    %528 = vmatprep.subr.mxu0 0.0
    %529 = vmatpush1.msra.mxu0 %v188
    %530 = vmatprep.subr.mxu0 0.0
    %531 = vmatpush1.msra.mxu0 %v187
    %532 = vmatprep.subr.mxu0 0.0
    %533 = vmatpush1.msra.mxu0 %v186
    %534 = vmatprep.subr.mxu0 0.0
    %535 = vmatpush1.msra.mxu0 %v185
    %536 = vmatprep.subr.mxu0 0.0
    %537 = vmatpush1.msra.mxu0 %v184
    %538 = vmatprep.subr.mxu0 0.0
    %539 = vmatpush1.msra.mxu0 %v183
    %540 = vmatprep.subr.mxu0 0.0
    %541 = vmatpush1.msra.mxu0 %v182
    %542 = vmatprep.subr.mxu0 0.0
    %543 = vmatpush1.msra.mxu0 %v181
    %544 = vmatprep.subr.mxu0 0.0
    %545 = vmatpush2.msra.mxu0 0.0
    %546 = vmatprep.subr.mxu0 0.0
    %547 = vmatpush2.msra.mxu0 0.0
    %548 = vmatprep.subr.mxu0 0.0
    %549 = vmatpush2.msra.mxu0 0.0
    %550 = vmatprep.subr.mxu0 0.0
    %551 = vmatpush2.msra.mxu0 0.0
    %552 = vmatprep.subr.mxu0 0.0
    %553 = vmatpush2.msra.mxu0 0.0
    %554 = vmatprep.subr.mxu0 0.0
    %555 = vmatpush2.msra.mxu0 0.0
    %556 = vmatprep.subr.mxu0 0.0
    %557 = vmatpush2.msra.mxu0 0.0
    %558 = vmatprep.subr.mxu0 0.0
    %559 = vmatpush2.msra.mxu0 0.0
    %560 = vmatprep.subr.mxu0 0.0
    %561 = vmatpush2.msra.mxu0 0.0
    %562 = vmatprep.subr.mxu0 0.0
    %563 = vmatpush2.msra.mxu0 0.0
    %564 = vmatprep.subr.mxu0 0.0
    %565 = vmatpush2.msra.mxu0 0.0
    %566 = vmatprep.subr.mxu0 0.0
    %567 = vmatpush2.msra.mxu0 0.0
    %568 = vmatprep.subr.mxu0 0.0
    %569 = vmatpush2.msra.mxu0 0.0
    %570 = vmatprep.subr.mxu0 0.0
    %571 = vmatpush2.msra.mxu0 0.0
    %572 = vmatprep.subr.mxu0 0.0
    %573 = vmatpush2.msra.mxu0 0.0
    %574 = vmatprep.subr.mxu0 0.0
    %575 = vmatpush2.msra.mxu0 0.0
    %576 = vmatprep.mubr.f32.mxu0 0.0
    %577 = vmatmul.mubr.f32.gmra.mxu0 %v165
    %v578 = vpop.f32.mrf.mxu0
    %v579 = vadd.f32 %v434, %v578
    %v580 = vpop.f32.mrf.mxu0
    %581 = vmatprep.mubr.f32.mxu0 0.0
    %582 = vmatmul.mubr.f32.gmra.mxu0 %v166
    %v583 = vpop.f32.mrf.mxu0
    %v584 = vadd.f32 %v439, %v583
    %v585 = vpop.f32.mrf.mxu0
    %586 = vmatprep.mubr.f32.mxu0 0.0
    %587 = vmatmul.mubr.f32.gmra.mxu0 %v167
    %v588 = vpop.f32.mrf.mxu0
    %v589 = vadd.f32 %v444, %v588
    %v590 = vpop.f32.mrf.mxu0
    %591 = vmatprep.mubr.f32.mxu0 0.0
    %592 = vmatmul.mubr.f32.gmra.mxu0 %v168
    %v593 = vpop.f32.mrf.mxu0
    %v594 = vadd.f32 %v449, %v593
    %v595 = vpop.f32.mrf.mxu0
    %596 = vmatprep.mubr.f32.mxu0 0.0
    %597 = vmatmul.mubr.f32.gmra.mxu0 %v169
    %v598 = vpop.f32.mrf.mxu0
    %v599 = vadd.f32 %v454, %v598
    %v600 = vpop.f32.mrf.mxu0
    %601 = vmatprep.mubr.f32.mxu0 0.0
    %602 = vmatmul.mubr.f32.gmra.mxu0 %v170
    %v603 = vpop.f32.mrf.mxu0
    %v604 = vadd.f32 %v459, %v603
    %v605 = vpop.f32.mrf.mxu0
    %606 = vmatprep.mubr.f32.mxu0 0.0
    %607 = vmatmul.mubr.f32.gmra.mxu0 %v171
    %v608 = vpop.f32.mrf.mxu0
    %v609 = vadd.f32 %v464, %v608
    %v610 = vpop.f32.mrf.mxu0
    %611 = vmatprep.mubr.f32.mxu0 0.0
    %612 = vmatmul.mubr.f32.gmra.mxu0 %v172
    %v613 = vpop.f32.mrf.mxu0
    %v614 = vadd.f32 %v469, %v613
    %v615 = vpop.f32.mrf.mxu0
    %616 = vmatprep.mubr.f32.mxu0 0.0
    %617 = vmatmul.mubr.f32.gmra.mxu0 %v173
    %v618 = vpop.f32.mrf.mxu0
    %v619 = vadd.f32 %v474, %v618
    %v620 = vpop.f32.mrf.mxu0
    %621 = vmatprep.mubr.f32.mxu0 0.0
    %622 = vmatmul.mubr.f32.gmra.mxu0 %v174
    %v623 = vpop.f32.mrf.mxu0
    %v624 = vadd.f32 %v479, %v623
    %v625 = vpop.f32.mrf.mxu0
    %626 = vmatprep.mubr.f32.mxu0 0.0
    %627 = vmatmul.mubr.f32.gmra.mxu0 %v175
    %v628 = vpop.f32.mrf.mxu0
    %v629 = vadd.f32 %v484, %v628
    %v630 = vpop.f32.mrf.mxu0
    %631 = vmatprep.mubr.f32.mxu0 0.0
    %632 = vmatmul.mubr.f32.gmra.mxu0 %v176
    %v633 = vpop.f32.mrf.mxu0
    %v634 = vadd.f32 %v489, %v633
    %v635 = vpop.f32.mrf.mxu0
    %636 = vmatprep.mubr.f32.mxu0 0.0
    %637 = vmatmul.mubr.f32.gmra.mxu0 %v177
    %v638 = vpop.f32.mrf.mxu0
    %v639 = vadd.f32 %v494, %v638
    %v640 = vpop.f32.mrf.mxu0
    %641 = vmatprep.mubr.f32.mxu0 0.0
    %642 = vmatmul.mubr.f32.gmra.mxu0 %v178
    %v643 = vpop.f32.mrf.mxu0
    %v644 = vadd.f32 %v499, %v643
    %v645 = vpop.f32.mrf.mxu0
    %646 = vmatprep.mubr.f32.mxu0 0.0
    %647 = vmatmul.mubr.f32.gmra.mxu0 %v179
    %v648 = vpop.f32.mrf.mxu0
    %v649 = vadd.f32 %v504, %v648
    %v650 = vpop.f32.mrf.mxu0
    %651 = vmatprep.mubr.f32.mxu0 0.0
    %652 = vmatmul.mubr.f32.gmra.mxu0 %v180
    %v653 = vpop.f32.mrf.mxu0
    %v654 = vadd.f32 %v509, %v653
    %v655 = vpop.f32.mrf.mxu0
    %656 = vdwg.mxu0
    %v658 = vlaneseq
    %v659 = vshrl.u32 %v658, 7
    %v660 = vsub.s32 0, %v659
    %v661 = vrot.slane %v213, %v660
    %v663 = vadd.f32 %v579, %v661
    %v664 = vadd.f32 %v584, %v661
    %v665 = vadd.f32 %v589, %v661
    %v666 = vadd.f32 %v594, %v661
    %v667 = vadd.f32 %v599, %v661
    %v668 = vadd.f32 %v604, %v661
    %v669 = vadd.f32 %v609, %v661
    %v670 = vadd.f32 %v614, %v661
    %v671 = vadd.f32 %v619, %v661
    %v672 = vadd.f32 %v624, %v661
    %v673 = vadd.f32 %v629, %v661
    %v674 = vadd.f32 %v634, %v661
    %v675 = vadd.f32 %v639, %v661
    %v676 = vadd.f32 %v644, %v661
    %v677 = vadd.f32 %v649, %v661
    %v678 = vadd.f32 %v654, %v661
    %v679 = vmax.f32 %v663, 0.0
    %v680 = vmax.f32 %v664, 0.0
    %v681 = vmax.f32 %v665, 0.0
    %v682 = vmax.f32 %v666, 0.0
    %v683 = vmax.f32 %v667, 0.0
    %v684 = vmax.f32 %v668, 0.0
    %v685 = vmax.f32 %v669, 0.0
    %v686 = vmax.f32 %v670, 0.0
    %v687 = vmax.f32 %v671, 0.0
    %v688 = vmax.f32 %v672, 0.0
    %v689 = vmax.f32 %v673, 0.0
    %v690 = vmax.f32 %v674, 0.0
    %v691 = vmax.f32 %v675, 0.0
    %v692 = vmax.f32 %v676, 0.0
    %v693 = vmax.f32 %v677, 0.0
    %v694 = vmax.f32 %v678, 0.0
    %v695 = vld [vmem:[#allocation10] sm:$0xff]
    %v696 = vld [vmem:[#allocation10 + $0x8] sm:$0xff]
    %v697 = vld [vmem:[#allocation10 + $0x10] sm:$0xff]
    %v698 = vld [vmem:[#allocation10 + $0x18] sm:$0xff]
    %v699 = vld [vmem:[#allocation10 + $0x20] sm:$0xff]
    %v700 = vld [vmem:[#allocation10 + $0x28] sm:$0xff]
    %v701 = vld [vmem:[#allocation10 + $0x30] sm:$0xff]
    %v702 = vld [vmem:[#allocation10 + $0x38] sm:$0xff]
    %v703 = vld [vmem:[#allocation10 + $0x40] sm:$0xff]
    %v704 = vld [vmem:[#allocation10 + $0x48] sm:$0xff]
    %v705 = vld [vmem:[#allocation10 + $0x50] sm:$0xff]
    %v706 = vld [vmem:[#allocation10 + $0x58] sm:$0xff]
    %v707 = vld [vmem:[#allocation10 + $0x60] sm:$0xff]
    %v708 = vld [vmem:[#allocation10 + $0x68] sm:$0xff]
    %v709 = vld [vmem:[#allocation10 + $0x70] sm:$0xff]
    %v710 = vld [vmem:[#allocation10 + $0x78] sm:$0xff]
    %v711 = vld [vmem:[#allocation11] sm:$0xff]
    %v712 = vld [vmem:[#allocation11 + $0x8] sm:$0xff]
    %v713 = vld [vmem:[#allocation11 + $0x10] sm:$0xff]
    %v714 = vld [vmem:[#allocation11 + $0x18] sm:$0xff]
    %v715 = vld [vmem:[#allocation11 + $0x20] sm:$0xff]
    %v716 = vld [vmem:[#allocation11 + $0x28] sm:$0xff]
    %v717 = vld [vmem:[#allocation11 + $0x30] sm:$0xff]
    %v718 = vld [vmem:[#allocation11 + $0x38] sm:$0xff]
    %v719 = vld [vmem:[#allocation11 + $0x40] sm:$0xff]
    %v720 = vld [vmem:[#allocation11 + $0x48] sm:$0xff]
    %v721 = vld [vmem:[#allocation11 + $0x50] sm:$0xff]
    %v722 = vld [vmem:[#allocation11 + $0x58] sm:$0xff]
    %v723 = vld [vmem:[#allocation11 + $0x60] sm:$0xff]
    %v724 = vld [vmem:[#allocation11 + $0x68] sm:$0xff]
    %v725 = vld [vmem:[#allocation11 + $0x70] sm:$0xff]
    %v726 = vld [vmem:[#allocation11 + $0x78] sm:$0xff]
    %v727 = vld [vmem:[%s7] sm:$0x1]
    %v728 = vpack.c.bf16 %v680, %v679
    %v729 = vpack.c.bf16 %v682, %v681
    %v730 = vpack.c.bf16 %v684, %v683
    %v731 = vpack.c.bf16 %v686, %v685
    %v732 = vpack.c.bf16 %v688, %v687
    %v733 = vpack.c.bf16 %v690, %v689
    %v734 = vpack.c.bf16 %v692, %v691
    %v735 = vpack.c.bf16 %v694, %v693
    %736 = vmatprep.subr.bf16.mxu0 0
    %737 = vmatpush1.bf16.msra.mxu0 %v735
    %738 = vmatprep.subr.bf16.mxu0 0
    %739 = vmatpush1.bf16.msra.mxu0 %v734
    %740 = vmatprep.subr.bf16.mxu0 0
    %741 = vmatpush1.bf16.msra.mxu0 %v733
    %742 = vmatprep.subr.bf16.mxu0 0
    %743 = vmatpush1.bf16.msra.mxu0 %v732
    %744 = vmatprep.subr.bf16.mxu0 0
    %745 = vmatpush1.bf16.msra.mxu0 %v731
    %746 = vmatprep.subr.bf16.mxu0 0
    %747 = vmatpush1.bf16.msra.mxu0 %v730
    %748 = vmatprep.subr.bf16.mxu0 0
    %749 = vmatpush1.bf16.msra.mxu0 %v729
    %750 = vmatprep.subr.bf16.mxu0 0
    %751 = vmatpush1.bf16.msra.mxu0 %v728
    %752 = vmatprep.subr.bf16.mxu0 0
    %753 = vmatpush2.bf16.msra.mxu0 0
    %754 = vmatprep.subr.bf16.mxu0 0
    %755 = vmatpush2.bf16.msra.mxu0 0
    %756 = vmatprep.subr.bf16.mxu0 0
    %757 = vmatpush2.bf16.msra.mxu0 0
    %758 = vmatprep.subr.bf16.mxu0 0
    %759 = vmatpush2.bf16.msra.mxu0 0
    %760 = vmatprep.subr.bf16.mxu0 0
    %761 = vmatpush2.bf16.msra.mxu0 0
    %762 = vmatprep.subr.bf16.mxu0 0
    %763 = vmatpush2.bf16.msra.mxu0 0
    %764 = vmatprep.subr.bf16.mxu0 0
    %765 = vmatpush2.bf16.msra.mxu0 0
    %766 = vmatprep.subr.bf16.mxu0 0
    %767 = vmatpush2.bf16.msra.mxu0 0
    %768 = vmatprep.mubr.bf16.mxu0 0
    %769 = vmatmul.mubr.bf16.gmra.mxu0 %v254
    %v770 = vpop.f32.mrf.mxu0
    %v771 = vadd.f32 0.0, %v770
    %v772 = vpop.f32.mrf.mxu0
    %v773 = vpop.f32.mrf.mxu0
    %v774 = vadd.f32 0.0, %v773
    %v775 = vpop.f32.mrf.mxu0
    %776 = vmatprep.mubr.bf16.mxu0 0
    %777 = vmatmul.mubr.bf16.gmra.mxu0 %v255
    %v778 = vpop.f32.mrf.mxu0
    %v779 = vadd.f32 0.0, %v778
    %v780 = vpop.f32.mrf.mxu0
    %v781 = vpop.f32.mrf.mxu0
    %v782 = vadd.f32 0.0, %v781
    %v783 = vpop.f32.mrf.mxu0
    %784 = vmatprep.mubr.bf16.mxu0 0
    %785 = vmatmul.mubr.bf16.gmra.mxu0 %v256
    %v786 = vpop.f32.mrf.mxu0
    %v787 = vadd.f32 0.0, %v786
    %v788 = vpop.f32.mrf.mxu0
    %v789 = vpop.f32.mrf.mxu0
    %v790 = vadd.f32 0.0, %v789
    %v791 = vpop.f32.mrf.mxu0
    %792 = vmatprep.mubr.bf16.mxu0 0
    %793 = vmatmul.mubr.bf16.gmra.mxu0 %v257
    %v794 = vpop.f32.mrf.mxu0
    %v795 = vadd.f32 0.0, %v794
    %v796 = vpop.f32.mrf.mxu0
    %v797 = vpop.f32.mrf.mxu0
    %v798 = vadd.f32 0.0, %v797
    %v799 = vpop.f32.mrf.mxu0
    %800 = vmatprep.mubr.bf16.mxu0 0
    %801 = vmatmul.mubr.bf16.gmra.mxu0 %v258
    %v802 = vpop.f32.mrf.mxu0
    %v803 = vadd.f32 0.0, %v802
    %v804 = vpop.f32.mrf.mxu0
    %v805 = vpop.f32.mrf.mxu0
    %v806 = vadd.f32 0.0, %v805
    %v807 = vpop.f32.mrf.mxu0
    %808 = vmatprep.mubr.bf16.mxu0 0
    %809 = vmatmul.mubr.bf16.gmra.mxu0 %v259
    %v810 = vpop.f32.mrf.mxu0
    %v811 = vadd.f32 0.0, %v810
    %v812 = vpop.f32.mrf.mxu0
    %v813 = vpop.f32.mrf.mxu0
    %v814 = vadd.f32 0.0, %v813
    %v815 = vpop.f32.mrf.mxu0
    %816 = vmatprep.mubr.bf16.mxu0 0
    %817 = vmatmul.mubr.bf16.gmra.mxu0 %v260
    %v818 = vpop.f32.mrf.mxu0
    %v819 = vadd.f32 0.0, %v818
    %v820 = vpop.f32.mrf.mxu0
    %v821 = vpop.f32.mrf.mxu0
    %v822 = vadd.f32 0.0, %v821
    %v823 = vpop.f32.mrf.mxu0
    %824 = vmatprep.mubr.bf16.mxu0 0
    %825 = vmatmul.mubr.bf16.gmra.mxu0 %v261
    %v826 = vpop.f32.mrf.mxu0
    %v827 = vadd.f32 0.0, %v826
    %v828 = vpop.f32.mrf.mxu0
    %v829 = vpop.f32.mrf.mxu0
    %v830 = vadd.f32 0.0, %v829
    %v831 = vpop.f32.mrf.mxu0
    %832 = vdwg.mxu0
    %833 = vmatprep.subr.mxu0 0.0
    %834 = vmatpush1.msra.mxu0 %v726
    %835 = vmatprep.subr.mxu0 0.0
    %836 = vmatpush1.msra.mxu0 %v725
    %837 = vmatprep.subr.mxu0 0.0
    %838 = vmatpush1.msra.mxu0 %v724
    %839 = vmatprep.subr.mxu0 0.0
    %840 = vmatpush1.msra.mxu0 %v723
    %841 = vmatprep.subr.mxu0 0.0
    %842 = vmatpush1.msra.mxu0 %v722
    %843 = vmatprep.subr.mxu0 0.0
    %844 = vmatpush1.msra.mxu0 %v721
    %845 = vmatprep.subr.mxu0 0.0
    %846 = vmatpush1.msra.mxu0 %v720
    %847 = vmatprep.subr.mxu0 0.0
    %848 = vmatpush1.msra.mxu0 %v719
    %849 = vmatprep.subr.mxu0 0.0
    %850 = vmatpush1.msra.mxu0 %v718
    %851 = vmatprep.subr.mxu0 0.0
    %852 = vmatpush1.msra.mxu0 %v717
    %853 = vmatprep.subr.mxu0 0.0
    %854 = vmatpush1.msra.mxu0 %v716
    %855 = vmatprep.subr.mxu0 0.0
    %856 = vmatpush1.msra.mxu0 %v715
    %857 = vmatprep.subr.mxu0 0.0
    %858 = vmatpush1.msra.mxu0 %v714
    %859 = vmatprep.subr.mxu0 0.0
    %860 = vmatpush1.msra.mxu0 %v713
    %861 = vmatprep.subr.mxu0 0.0
    %862 = vmatpush1.msra.mxu0 %v712
    %863 = vmatprep.subr.mxu0 0.0
    %864 = vmatpush1.msra.mxu0 %v711
    %865 = vmatprep.subr.mxu0 0.0
    %866 = vmatpush2.msra.mxu0 0.0
    %867 = vmatprep.subr.mxu0 0.0
    %868 = vmatpush2.msra.mxu0 0.0
    %869 = vmatprep.subr.mxu0 0.0
    %870 = vmatpush2.msra.mxu0 0.0
    %871 = vmatprep.subr.mxu0 0.0
    %872 = vmatpush2.msra.mxu0 0.0
    %873 = vmatprep.subr.mxu0 0.0
    %874 = vmatpush2.msra.mxu0 0.0
    %875 = vmatprep.subr.mxu0 0.0
    %876 = vmatpush2.msra.mxu0 0.0
    %877 = vmatprep.subr.mxu0 0.0
    %878 = vmatpush2.msra.mxu0 0.0
    %879 = vmatprep.subr.mxu0 0.0
    %880 = vmatpush2.msra.mxu0 0.0
    %881 = vmatprep.subr.mxu0 0.0
    %882 = vmatpush2.msra.mxu0 0.0
    %883 = vmatprep.subr.mxu0 0.0
    %884 = vmatpush2.msra.mxu0 0.0
    %885 = vmatprep.subr.mxu0 0.0
    %886 = vmatpush2.msra.mxu0 0.0
    %887 = vmatprep.subr.mxu0 0.0
    %888 = vmatpush2.msra.mxu0 0.0
    %889 = vmatprep.subr.mxu0 0.0
    %890 = vmatpush2.msra.mxu0 0.0
    %891 = vmatprep.subr.mxu0 0.0
    %892 = vmatpush2.msra.mxu0 0.0
    %893 = vmatprep.subr.mxu0 0.0
    %894 = vmatpush2.msra.mxu0 0.0
    %895 = vmatprep.subr.mxu0 0.0
    %896 = vmatpush2.msra.mxu0 0.0
    %897 = vmatprep.mubr.f32.mxu0 0.0
    %898 = vmatmul.mubr.f32.gmra.mxu0 %v771
    %v899 = vpop.f32.mrf.mxu0
    %v900 = vadd.f32 0.0, %v899
    %v901 = vpop.f32.mrf.mxu0
    %902 = vmatprep.mubr.f32.mxu0 0.0
    %903 = vmatmul.mubr.f32.gmra.mxu0 %v774
    %v904 = vpop.f32.mrf.mxu0
    %v905 = vadd.f32 0.0, %v904
    %v906 = vpop.f32.mrf.mxu0
    %907 = vmatprep.mubr.f32.mxu0 0.0
    %908 = vmatmul.mubr.f32.gmra.mxu0 %v779
    %v909 = vpop.f32.mrf.mxu0
    %v910 = vadd.f32 0.0, %v909
    %v911 = vpop.f32.mrf.mxu0
    %912 = vmatprep.mubr.f32.mxu0 0.0
    %913 = vmatmul.mubr.f32.gmra.mxu0 %v782
    %v914 = vpop.f32.mrf.mxu0
    %v915 = vadd.f32 0.0, %v914
    %v916 = vpop.f32.mrf.mxu0
    %917 = vmatprep.mubr.f32.mxu0 0.0
    %918 = vmatmul.mubr.f32.gmra.mxu0 %v787
    %v919 = vpop.f32.mrf.mxu0
    %v920 = vadd.f32 0.0, %v919
    %v921 = vpop.f32.mrf.mxu0
    %922 = vmatprep.mubr.f32.mxu0 0.0
    %923 = vmatmul.mubr.f32.gmra.mxu0 %v790
    %v924 = vpop.f32.mrf.mxu0
    %v925 = vadd.f32 0.0, %v924
    %v926 = vpop.f32.mrf.mxu0
    %927 = vmatprep.mubr.f32.mxu0 0.0
    %928 = vmatmul.mubr.f32.gmra.mxu0 %v795
    %v929 = vpop.f32.mrf.mxu0
    %v930 = vadd.f32 0.0, %v929
    %v931 = vpop.f32.mrf.mxu0
    %932 = vmatprep.mubr.f32.mxu0 0.0
    %933 = vmatmul.mubr.f32.gmra.mxu0 %v798
    %v934 = vpop.f32.mrf.mxu0
    %v935 = vadd.f32 0.0, %v934
    %v936 = vpop.f32.mrf.mxu0
    %937 = vmatprep.mubr.f32.mxu0 0.0
    %938 = vmatmul.mubr.f32.gmra.mxu0 %v803
    %v939 = vpop.f32.mrf.mxu0
    %v940 = vadd.f32 0.0, %v939
    %v941 = vpop.f32.mrf.mxu0
    %942 = vmatprep.mubr.f32.mxu0 0.0
    %943 = vmatmul.mubr.f32.gmra.mxu0 %v806
    %v944 = vpop.f32.mrf.mxu0
    %v945 = vadd.f32 0.0, %v944
    %v946 = vpop.f32.mrf.mxu0
    %947 = vmatprep.mubr.f32.mxu0 0.0
    %948 = vmatmul.mubr.f32.gmra.mxu0 %v811
    %v949 = vpop.f32.mrf.mxu0
    %v950 = vadd.f32 0.0, %v949
    %v951 = vpop.f32.mrf.mxu0
    %952 = vmatprep.mubr.f32.mxu0 0.0
    %953 = vmatmul.mubr.f32.gmra.mxu0 %v814
    %v954 = vpop.f32.mrf.mxu0
    %v955 = vadd.f32 0.0, %v954
    %v956 = vpop.f32.mrf.mxu0
    %957 = vmatprep.mubr.f32.mxu0 0.0
    %958 = vmatmul.mubr.f32.gmra.mxu0 %v819
    %v959 = vpop.f32.mrf.mxu0
    %v960 = vadd.f32 0.0, %v959
    %v961 = vpop.f32.mrf.mxu0
    %962 = vmatprep.mubr.f32.mxu0 0.0
    %963 = vmatmul.mubr.f32.gmra.mxu0 %v822
    %v964 = vpop.f32.mrf.mxu0
    %v965 = vadd.f32 0.0, %v964
    %v966 = vpop.f32.mrf.mxu0
    %967 = vmatprep.mubr.f32.mxu0 0.0
    %968 = vmatmul.mubr.f32.gmra.mxu0 %v827
    %v969 = vpop.f32.mrf.mxu0
    %v970 = vadd.f32 0.0, %v969
    %v971 = vpop.f32.mrf.mxu0
    %972 = vmatprep.mubr.f32.mxu0 0.0
    %973 = vmatmul.mubr.f32.gmra.mxu0 %v830
    %v974 = vpop.f32.mrf.mxu0
    %v975 = vadd.f32 0.0, %v974
    %v976 = vpop.f32.mrf.mxu0
    %977 = vdwg.mxu0
    %978 = vmatprep.subr.mxu0 0.0
    %979 = vmatpush1.msra.mxu0 %v710
    %980 = vmatprep.subr.mxu0 0.0
    %981 = vmatpush1.msra.mxu0 %v709
    %982 = vmatprep.subr.mxu0 0.0
    %983 = vmatpush1.msra.mxu0 %v708
    %984 = vmatprep.subr.mxu0 0.0
    %985 = vmatpush1.msra.mxu0 %v707
    %986 = vmatprep.subr.mxu0 0.0
    %987 = vmatpush1.msra.mxu0 %v706
    %988 = vmatprep.subr.mxu0 0.0
    %989 = vmatpush1.msra.mxu0 %v705
    %990 = vmatprep.subr.mxu0 0.0
    %991 = vmatpush1.msra.mxu0 %v704
    %992 = vmatprep.subr.mxu0 0.0
    %993 = vmatpush1.msra.mxu0 %v703
    %994 = vmatprep.subr.mxu0 0.0
    %995 = vmatpush1.msra.mxu0 %v702
    %996 = vmatprep.subr.mxu0 0.0
    %997 = vmatpush1.msra.mxu0 %v701
    %998 = vmatprep.subr.mxu0 0.0
    %999 = vmatpush1.msra.mxu0 %v700
    %1000 = vmatprep.subr.mxu0 0.0
    %1001 = vmatpush1.msra.mxu0 %v699
    %1002 = vmatprep.subr.mxu0 0.0
    %1003 = vmatpush1.msra.mxu0 %v698
    %1004 = vmatprep.subr.mxu0 0.0
    %1005 = vmatpush1.msra.mxu0 %v697
    %1006 = vmatprep.subr.mxu0 0.0
    %1007 = vmatpush1.msra.mxu0 %v696
    %1008 = vmatprep.subr.mxu0 0.0
    %1009 = vmatpush1.msra.mxu0 %v695
    %1010 = vmatprep.subr.mxu0 0.0
    %1011 = vmatpush2.msra.mxu0 0.0
    %1012 = vmatprep.subr.mxu0 0.0
    %1013 = vmatpush2.msra.mxu0 0.0
    %1014 = vmatprep.subr.mxu0 0.0
    %1015 = vmatpush2.msra.mxu0 0.0
    %1016 = vmatprep.subr.mxu0 0.0
    %1017 = vmatpush2.msra.mxu0 0.0
    %1018 = vmatprep.subr.mxu0 0.0
    %1019 = vmatpush2.msra.mxu0 0.0
    %1020 = vmatprep.subr.mxu0 0.0
    %1021 = vmatpush2.msra.mxu0 0.0
    %1022 = vmatprep.subr.mxu0 0.0
    %1023 = vmatpush2.msra.mxu0 0.0
    %1024 = vmatprep.subr.mxu0 0.0
    %1025 = vmatpush2.msra.mxu0 0.0
    %1026 = vmatprep.subr.mxu0 0.0
    %1027 = vmatpush2.msra.mxu0 0.0
    %1028 = vmatprep.subr.mxu0 0.0
    %1029 = vmatpush2.msra.mxu0 0.0
    %1030 = vmatprep.subr.mxu0 0.0
    %1031 = vmatpush2.msra.mxu0 0.0
    %1032 = vmatprep.subr.mxu0 0.0
    %1033 = vmatpush2.msra.mxu0 0.0
    %1034 = vmatprep.subr.mxu0 0.0
    %1035 = vmatpush2.msra.mxu0 0.0
    %1036 = vmatprep.subr.mxu0 0.0
    %1037 = vmatpush2.msra.mxu0 0.0
    %1038 = vmatprep.subr.mxu0 0.0
    %1039 = vmatpush2.msra.mxu0 0.0
    %1040 = vmatprep.subr.mxu0 0.0
    %1041 = vmatpush2.msra.mxu0 0.0
    %1042 = vmatprep.mubr.f32.mxu0 0.0
    %1043 = vmatmul.mubr.f32.gmra.mxu0 %v679
    %v1044 = vpop.f32.mrf.mxu0
    %v1045 = vadd.f32 %v900, %v1044
    %v1046 = vpop.f32.mrf.mxu0
    %1047 = vmatprep.mubr.f32.mxu0 0.0
    %1048 = vmatmul.mubr.f32.gmra.mxu0 %v680
    %v1049 = vpop.f32.mrf.mxu0
    %v1050 = vadd.f32 %v905, %v1049
    %v1051 = vpop.f32.mrf.mxu0
    %1052 = vmatprep.mubr.f32.mxu0 0.0
    %1053 = vmatmul.mubr.f32.gmra.mxu0 %v681
    %v1054 = vpop.f32.mrf.mxu0
    %v1055 = vadd.f32 %v910, %v1054
    %v1056 = vpop.f32.mrf.mxu0
    %1057 = vmatprep.mubr.f32.mxu0 0.0
    %1058 = vmatmul.mubr.f32.gmra.mxu0 %v682
    %v1059 = vpop.f32.mrf.mxu0
    %v1060 = vadd.f32 %v915, %v1059
    %v1061 = vpop.f32.mrf.mxu0
    %1062 = vmatprep.mubr.f32.mxu0 0.0
    %1063 = vmatmul.mubr.f32.gmra.mxu0 %v683
    %v1064 = vpop.f32.mrf.mxu0
    %v1065 = vadd.f32 %v920, %v1064
    %v1066 = vpop.f32.mrf.mxu0
    %1067 = vmatprep.mubr.f32.mxu0 0.0
    %1068 = vmatmul.mubr.f32.gmra.mxu0 %v684
    %v1069 = vpop.f32.mrf.mxu0
    %v1070 = vadd.f32 %v925, %v1069
    %v1071 = vpop.f32.mrf.mxu0
    %1072 = vmatprep.mubr.f32.mxu0 0.0
    %1073 = vmatmul.mubr.f32.gmra.mxu0 %v685
    %v1074 = vpop.f32.mrf.mxu0
    %v1075 = vadd.f32 %v930, %v1074
    %v1076 = vpop.f32.mrf.mxu0
    %1077 = vmatprep.mubr.f32.mxu0 0.0
    %1078 = vmatmul.mubr.f32.gmra.mxu0 %v686
    %v1079 = vpop.f32.mrf.mxu0
    %v1080 = vadd.f32 %v935, %v1079
    %v1081 = vpop.f32.mrf.mxu0
    %1082 = vmatprep.mubr.f32.mxu0 0.0
    %1083 = vmatmul.mubr.f32.gmra.mxu0 %v687
    %v1084 = vpop.f32.mrf.mxu0
    %v1085 = vadd.f32 %v940, %v1084
    %v1086 = vpop.f32.mrf.mxu0
    %1087 = vmatprep.mubr.f32.mxu0 0.0
    %1088 = vmatmul.mubr.f32.gmra.mxu0 %v688
    %v1089 = vpop.f32.mrf.mxu0
    %v1090 = vadd.f32 %v945, %v1089
    %v1091 = vpop.f32.mrf.mxu0
    %1092 = vmatprep.mubr.f32.mxu0 0.0
    %1093 = vmatmul.mubr.f32.gmra.mxu0 %v689
    %v1094 = vpop.f32.mrf.mxu0
    %v1095 = vadd.f32 %v950, %v1094
    %v1096 = vpop.f32.mrf.mxu0
    %1097 = vmatprep.mubr.f32.mxu0 0.0
    %1098 = vmatmul.mubr.f32.gmra.mxu0 %v690
    %v1099 = vpop.f32.mrf.mxu0
    %v1100 = vadd.f32 %v955, %v1099
    %v1101 = vpop.f32.mrf.mxu0
    %1102 = vmatprep.mubr.f32.mxu0 0.0
    %1103 = vmatmul.mubr.f32.gmra.mxu0 %v691
    %v1104 = vpop.f32.mrf.mxu0
    %v1105 = vadd.f32 %v960, %v1104
    %v1106 = vpop.f32.mrf.mxu0
    %1107 = vmatprep.mubr.f32.mxu0 0.0
    %1108 = vmatmul.mubr.f32.gmra.mxu0 %v692
    %v1109 = vpop.f32.mrf.mxu0
    %v1110 = vadd.f32 %v965, %v1109
    %v1111 = vpop.f32.mrf.mxu0
    %1112 = vmatprep.mubr.f32.mxu0 0.0
    %1113 = vmatmul.mubr.f32.gmra.mxu0 %v693
    %v1114 = vpop.f32.mrf.mxu0
    %v1115 = vadd.f32 %v970, %v1114
    %v1116 = vpop.f32.mrf.mxu0
    %1117 = vmatprep.mubr.f32.mxu0 0.0
    %1118 = vmatmul.mubr.f32.gmra.mxu0 %v694
    %v1119 = vpop.f32.mrf.mxu0
    %v1120 = vadd.f32 %v975, %v1119
    %v1121 = vpop.f32.mrf.mxu0
    %1122 = vdwg.mxu0
    %v1124 = vlaneseq
    %v1125 = vshrl.u32 %v1124, 7
    %v1126 = vsub.s32 0, %v1125
    %v1127 = vrot.slane %v727, %v1126
    %v1129 = vadd.f32 %v1045, %v1127
    %v1130 = vadd.f32 %v1050, %v1127
    %v1131 = vadd.f32 %v1055, %v1127
    %v1132 = vadd.f32 %v1060, %v1127
    %v1133 = vadd.f32 %v1065, %v1127
    %v1134 = vadd.f32 %v1070, %v1127
    %v1135 = vadd.f32 %v1075, %v1127
    %v1136 = vadd.f32 %v1080, %v1127
    %v1137 = vadd.f32 %v1085, %v1127
    %v1138 = vadd.f32 %v1090, %v1127
    %v1139 = vadd.f32 %v1095, %v1127
    %v1140 = vadd.f32 %v1100, %v1127
    %v1141 = vadd.f32 %v1105, %v1127
    %v1142 = vadd.f32 %v1110, %v1127
    %v1143 = vadd.f32 %v1115, %v1127
    %v1144 = vadd.f32 %v1120, %v1127
    %v1145 = vmax.f32 %v1129, 0.0
    %v1146 = vmax.f32 %v1130, 0.0
    %v1147 = vmax.f32 %v1131, 0.0
    %v1148 = vmax.f32 %v1132, 0.0
    %v1149 = vmax.f32 %v1133, 0.0
    %v1150 = vmax.f32 %v1134, 0.0
    %v1151 = vmax.f32 %v1135, 0.0
    %v1152 = vmax.f32 %v1136, 0.0
    %v1153 = vmax.f32 %v1137, 0.0
    %v1154 = vmax.f32 %v1138, 0.0
    %v1155 = vmax.f32 %v1139, 0.0
    %v1156 = vmax.f32 %v1140, 0.0
    %v1157 = vmax.f32 %v1141, 0.0
    %v1158 = vmax.f32 %v1142, 0.0
    %v1159 = vmax.f32 %v1143, 0.0
    %v1160 = vmax.f32 %v1144, 0.0
    %v1161 = vld [vmem:[#allocation13] sm:$0xff]
    %v1162 = vld [vmem:[#allocation13 + $0x8] sm:$0xff]
    %v1163 = vld [vmem:[#allocation13 + $0x10] sm:$0xff]
    %v1164 = vld [vmem:[#allocation13 + $0x18] sm:$0xff]
    %v1165 = vld [vmem:[#allocation13 + $0x20] sm:$0xff]
    %v1166 = vld [vmem:[#allocation13 + $0x28] sm:$0xff]
    %v1167 = vld [vmem:[#allocation13 + $0x30] sm:$0xff]
    %v1168 = vld [vmem:[#allocation13 + $0x38] sm:$0xff]
    %v1169 = vld [vmem:[#allocation13 + $0x40] sm:$0xff]
    %v1170 = vld [vmem:[#allocation13 + $0x48] sm:$0xff]
    %v1171 = vld [vmem:[#allocation13 + $0x50] sm:$0xff]
    %v1172 = vld [vmem:[#allocation13 + $0x58] sm:$0xff]
    %v1173 = vld [vmem:[#allocation13 + $0x60] sm:$0xff]
    %v1174 = vld [vmem:[#allocation13 + $0x68] sm:$0xff]
    %v1175 = vld [vmem:[#allocation13 + $0x70] sm:$0xff]
    %v1176 = vld [vmem:[#allocation13 + $0x78] sm:$0xff]
    %v1177 = vld [vmem:[#allocation14] sm:$0xff]
    %v1178 = vld [vmem:[#allocation14 + $0x8] sm:$0xff]
    %v1179 = vld [vmem:[#allocation14 + $0x10] sm:$0xff]
    %v1180 = vld [vmem:[#allocation14 + $0x18] sm:$0xff]
    %v1181 = vld [vmem:[#allocation14 + $0x20] sm:$0xff]
    %v1182 = vld [vmem:[#allocation14 + $0x28] sm:$0xff]
    %v1183 = vld [vmem:[#allocation14 + $0x30] sm:$0xff]
    %v1184 = vld [vmem:[#allocation14 + $0x38] sm:$0xff]
    %v1185 = vld [vmem:[#allocation14 + $0x40] sm:$0xff]
    %v1186 = vld [vmem:[#allocation14 + $0x48] sm:$0xff]
    %v1187 = vld [vmem:[#allocation14 + $0x50] sm:$0xff]
    %v1188 = vld [vmem:[#allocation14 + $0x58] sm:$0xff]
    %v1189 = vld [vmem:[#allocation14 + $0x60] sm:$0xff]
    %v1190 = vld [vmem:[#allocation14 + $0x68] sm:$0xff]
    %v1191 = vld [vmem:[#allocation14 + $0x70] sm:$0xff]
    %v1192 = vld [vmem:[#allocation14 + $0x78] sm:$0xff]
    %v1193 = vld [vmem:[%s10] sm:$0x1]
    %v1194 = vpack.c.bf16 %v1146, %v1145
    %v1195 = vpack.c.bf16 %v1148, %v1147
    %v1196 = vpack.c.bf16 %v1150, %v1149
    %v1197 = vpack.c.bf16 %v1152, %v1151
    %v1198 = vpack.c.bf16 %v1154, %v1153
    %v1199 = vpack.c.bf16 %v1156, %v1155
    %v1200 = vpack.c.bf16 %v1158, %v1157
    %v1201 = vpack.c.bf16 %v1160, %v1159
    %1202 = vmatprep.subr.bf16.mxu0 0
    %1203 = vmatpush1.bf16.msra.mxu0 %v1201
    %1204 = vmatprep.subr.bf16.mxu0 0
    %1205 = vmatpush1.bf16.msra.mxu0 %v1200
    %1206 = vmatprep.subr.bf16.mxu0 0
    %1207 = vmatpush1.bf16.msra.mxu0 %v1199
    %1208 = vmatprep.subr.bf16.mxu0 0
    %1209 = vmatpush1.bf16.msra.mxu0 %v1198
    %1210 = vmatprep.subr.bf16.mxu0 0
    %1211 = vmatpush1.bf16.msra.mxu0 %v1197
    %1212 = vmatprep.subr.bf16.mxu0 0
    %1213 = vmatpush1.bf16.msra.mxu0 %v1196
    %1214 = vmatprep.subr.bf16.mxu0 0
    %1215 = vmatpush1.bf16.msra.mxu0 %v1195
    %1216 = vmatprep.subr.bf16.mxu0 0
    %1217 = vmatpush1.bf16.msra.mxu0 %v1194
    %1218 = vmatprep.subr.bf16.mxu0 0
    %1219 = vmatpush2.bf16.msra.mxu0 0
    %1220 = vmatprep.subr.bf16.mxu0 0
    %1221 = vmatpush2.bf16.msra.mxu0 0
    %1222 = vmatprep.subr.bf16.mxu0 0
    %1223 = vmatpush2.bf16.msra.mxu0 0
    %1224 = vmatprep.subr.bf16.mxu0 0
    %1225 = vmatpush2.bf16.msra.mxu0 0
    %1226 = vmatprep.subr.bf16.mxu0 0
    %1227 = vmatpush2.bf16.msra.mxu0 0
    %1228 = vmatprep.subr.bf16.mxu0 0
    %1229 = vmatpush2.bf16.msra.mxu0 0
    %1230 = vmatprep.subr.bf16.mxu0 0
    %1231 = vmatpush2.bf16.msra.mxu0 0
    %1232 = vmatprep.subr.bf16.mxu0 0
    %1233 = vmatpush2.bf16.msra.mxu0 0
    %1234 = vmatprep.mubr.bf16.mxu0 0
    %1235 = vmatmul.mubr.bf16.gmra.mxu0 %v254
    %v1236 = vpop.f32.mrf.mxu0
    %v1237 = vadd.f32 0.0, %v1236
    %v1238 = vpop.f32.mrf.mxu0
    %v1239 = vpop.f32.mrf.mxu0
    %v1240 = vadd.f32 0.0, %v1239
    %v1241 = vpop.f32.mrf.mxu0
    %1242 = vmatprep.mubr.bf16.mxu0 0
    %1243 = vmatmul.mubr.bf16.gmra.mxu0 %v255
    %v1244 = vpop.f32.mrf.mxu0
    %v1245 = vadd.f32 0.0, %v1244
    %v1246 = vpop.f32.mrf.mxu0
    %v1247 = vpop.f32.mrf.mxu0
    %v1248 = vadd.f32 0.0, %v1247
    %v1249 = vpop.f32.mrf.mxu0
    %1250 = vmatprep.mubr.bf16.mxu0 0
    %1251 = vmatmul.mubr.bf16.gmra.mxu0 %v256
    %v1252 = vpop.f32.mrf.mxu0
    %v1253 = vadd.f32 0.0, %v1252
    %v1254 = vpop.f32.mrf.mxu0
    %v1255 = vpop.f32.mrf.mxu0
    %v1256 = vadd.f32 0.0, %v1255
    %v1257 = vpop.f32.mrf.mxu0
    %1258 = vmatprep.mubr.bf16.mxu0 0
    %1259 = vmatmul.mubr.bf16.gmra.mxu0 %v257
    %v1260 = vpop.f32.mrf.mxu0
    %v1261 = vadd.f32 0.0, %v1260
    %v1262 = vpop.f32.mrf.mxu0
    %v1263 = vpop.f32.mrf.mxu0
    %v1264 = vadd.f32 0.0, %v1263
    %v1265 = vpop.f32.mrf.mxu0
    %1266 = vmatprep.mubr.bf16.mxu0 0
    %1267 = vmatmul.mubr.bf16.gmra.mxu0 %v258
    %v1268 = vpop.f32.mrf.mxu0
    %v1269 = vadd.f32 0.0, %v1268
    %v1270 = vpop.f32.mrf.mxu0
    %v1271 = vpop.f32.mrf.mxu0
    %v1272 = vadd.f32 0.0, %v1271
    %v1273 = vpop.f32.mrf.mxu0
    %1274 = vmatprep.mubr.bf16.mxu0 0
    %1275 = vmatmul.mubr.bf16.gmra.mxu0 %v259
    %v1276 = vpop.f32.mrf.mxu0
    %v1277 = vadd.f32 0.0, %v1276
    %v1278 = vpop.f32.mrf.mxu0
    %v1279 = vpop.f32.mrf.mxu0
    %v1280 = vadd.f32 0.0, %v1279
    %v1281 = vpop.f32.mrf.mxu0
    %1282 = vmatprep.mubr.bf16.mxu0 0
    %1283 = vmatmul.mubr.bf16.gmra.mxu0 %v260
    %v1284 = vpop.f32.mrf.mxu0
    %v1285 = vadd.f32 0.0, %v1284
    %v1286 = vpop.f32.mrf.mxu0
    %v1287 = vpop.f32.mrf.mxu0
    %v1288 = vadd.f32 0.0, %v1287
    %v1289 = vpop.f32.mrf.mxu0
    %1290 = vmatprep.mubr.bf16.mxu0 0
    %1291 = vmatmul.mubr.bf16.gmra.mxu0 %v261
    %v1292 = vpop.f32.mrf.mxu0
    %v1293 = vadd.f32 0.0, %v1292
    %v1294 = vpop.f32.mrf.mxu0
    %v1295 = vpop.f32.mrf.mxu0
    %v1296 = vadd.f32 0.0, %v1295
    %v1297 = vpop.f32.mrf.mxu0
    %1298 = vdwg.mxu0
    %1299 = vmatprep.subr.mxu0 0.0
    %1300 = vmatpush1.msra.mxu0 %v1192
    %1301 = vmatprep.subr.mxu0 0.0
    %1302 = vmatpush1.msra.mxu0 %v1191
    %1303 = vmatprep.subr.mxu0 0.0
    %1304 = vmatpush1.msra.mxu0 %v1190
    %1305 = vmatprep.subr.mxu0 0.0
    %1306 = vmatpush1.msra.mxu0 %v1189
    %1307 = vmatprep.subr.mxu0 0.0
    %1308 = vmatpush1.msra.mxu0 %v1188
    %1309 = vmatprep.subr.mxu0 0.0
    %1310 = vmatpush1.msra.mxu0 %v1187
    %1311 = vmatprep.subr.mxu0 0.0
    %1312 = vmatpush1.msra.mxu0 %v1186
    %1313 = vmatprep.subr.mxu0 0.0
    %1314 = vmatpush1.msra.mxu0 %v1185
    %1315 = vmatprep.subr.mxu0 0.0
    %1316 = vmatpush1.msra.mxu0 %v1184
    %1317 = vmatprep.subr.mxu0 0.0
    %1318 = vmatpush1.msra.mxu0 %v1183
    %1319 = vmatprep.subr.mxu0 0.0
    %1320 = vmatpush1.msra.mxu0 %v1182
    %1321 = vmatprep.subr.mxu0 0.0
    %1322 = vmatpush1.msra.mxu0 %v1181
    %1323 = vmatprep.subr.mxu0 0.0
    %1324 = vmatpush1.msra.mxu0 %v1180
    %1325 = vmatprep.subr.mxu0 0.0
    %1326 = vmatpush1.msra.mxu0 %v1179
    %1327 = vmatprep.subr.mxu0 0.0
    %1328 = vmatpush1.msra.mxu0 %v1178
    %1329 = vmatprep.subr.mxu0 0.0
    %1330 = vmatpush1.msra.mxu0 %v1177
    %1331 = vmatprep.subr.mxu0 0.0
    %1332 = vmatpush2.msra.mxu0 0.0
    %1333 = vmatprep.subr.mxu0 0.0
    %1334 = vmatpush2.msra.mxu0 0.0
    %1335 = vmatprep.subr.mxu0 0.0
    %1336 = vmatpush2.msra.mxu0 0.0
    %1337 = vmatprep.subr.mxu0 0.0
    %1338 = vmatpush2.msra.mxu0 0.0
    %1339 = vmatprep.subr.mxu0 0.0
    %1340 = vmatpush2.msra.mxu0 0.0
    %1341 = vmatprep.subr.mxu0 0.0
    %1342 = vmatpush2.msra.mxu0 0.0
    %1343 = vmatprep.subr.mxu0 0.0
    %1344 = vmatpush2.msra.mxu0 0.0
    %1345 = vmatprep.subr.mxu0 0.0
    %1346 = vmatpush2.msra.mxu0 0.0
    %1347 = vmatprep.subr.mxu0 0.0
    %1348 = vmatpush2.msra.mxu0 0.0
    %1349 = vmatprep.subr.mxu0 0.0
    %1350 = vmatpush2.msra.mxu0 0.0
    %1351 = vmatprep.subr.mxu0 0.0
    %1352 = vmatpush2.msra.mxu0 0.0
    %1353 = vmatprep.subr.mxu0 0.0
    %1354 = vmatpush2.msra.mxu0 0.0
    %1355 = vmatprep.subr.mxu0 0.0
    %1356 = vmatpush2.msra.mxu0 0.0
    %1357 = vmatprep.subr.mxu0 0.0
    %1358 = vmatpush2.msra.mxu0 0.0
    %1359 = vmatprep.subr.mxu0 0.0
    %1360 = vmatpush2.msra.mxu0 0.0
    %1361 = vmatprep.subr.mxu0 0.0
    %1362 = vmatpush2.msra.mxu0 0.0
    %1363 = vmatprep.mubr.f32.mxu0 0.0
    %1364 = vmatmul.mubr.f32.gmra.mxu0 %v1237
    %v1365 = vpop.f32.mrf.mxu0
    %v1366 = vadd.f32 0.0, %v1365
    %v1367 = vpop.f32.mrf.mxu0
    %1368 = vmatprep.mubr.f32.mxu0 0.0
    %1369 = vmatmul.mubr.f32.gmra.mxu0 %v1240
    %v1370 = vpop.f32.mrf.mxu0
    %v1371 = vadd.f32 0.0, %v1370
    %v1372 = vpop.f32.mrf.mxu0
    %1373 = vmatprep.mubr.f32.mxu0 0.0
    %1374 = vmatmul.mubr.f32.gmra.mxu0 %v1245
    %v1375 = vpop.f32.mrf.mxu0
    %v1376 = vadd.f32 0.0, %v1375
    %v1377 = vpop.f32.mrf.mxu0
    %1378 = vmatprep.mubr.f32.mxu0 0.0
    %1379 = vmatmul.mubr.f32.gmra.mxu0 %v1248
    %v1380 = vpop.f32.mrf.mxu0
    %v1381 = vadd.f32 0.0, %v1380
    %v1382 = vpop.f32.mrf.mxu0
    %1383 = vmatprep.mubr.f32.mxu0 0.0
    %1384 = vmatmul.mubr.f32.gmra.mxu0 %v1253
    %v1385 = vpop.f32.mrf.mxu0
    %v1386 = vadd.f32 0.0, %v1385
    %v1387 = vpop.f32.mrf.mxu0
    %1388 = vmatprep.mubr.f32.mxu0 0.0
    %1389 = vmatmul.mubr.f32.gmra.mxu0 %v1256
    %v1390 = vpop.f32.mrf.mxu0
    %v1391 = vadd.f32 0.0, %v1390
    %v1392 = vpop.f32.mrf.mxu0
    %1393 = vmatprep.mubr.f32.mxu0 0.0
    %1394 = vmatmul.mubr.f32.gmra.mxu0 %v1261
    %v1395 = vpop.f32.mrf.mxu0
    %v1396 = vadd.f32 0.0, %v1395
    %v1397 = vpop.f32.mrf.mxu0
    %1398 = vmatprep.mubr.f32.mxu0 0.0
    %1399 = vmatmul.mubr.f32.gmra.mxu0 %v1264
    %v1400 = vpop.f32.mrf.mxu0
    %v1401 = vadd.f32 0.0, %v1400
    %v1402 = vpop.f32.mrf.mxu0
    %1403 = vmatprep.mubr.f32.mxu0 0.0
    %1404 = vmatmul.mubr.f32.gmra.mxu0 %v1269
    %v1405 = vpop.f32.mrf.mxu0
    %v1406 = vadd.f32 0.0, %v1405
    %v1407 = vpop.f32.mrf.mxu0
    %1408 = vmatprep.mubr.f32.mxu0 0.0
    %1409 = vmatmul.mubr.f32.gmra.mxu0 %v1272
    %v1410 = vpop.f32.mrf.mxu0
    %v1411 = vadd.f32 0.0, %v1410
    %v1412 = vpop.f32.mrf.mxu0
    %1413 = vmatprep.mubr.f32.mxu0 0.0
    %1414 = vmatmul.mubr.f32.gmra.mxu0 %v1277
    %v1415 = vpop.f32.mrf.mxu0
    %v1416 = vadd.f32 0.0, %v1415
    %v1417 = vpop.f32.mrf.mxu0
    %1418 = vmatprep.mubr.f32.mxu0 0.0
    %1419 = vmatmul.mubr.f32.gmra.mxu0 %v1280
    %v1420 = vpop.f32.mrf.mxu0
    %v1421 = vadd.f32 0.0, %v1420
    %v1422 = vpop.f32.mrf.mxu0
    %1423 = vmatprep.mubr.f32.mxu0 0.0
    %1424 = vmatmul.mubr.f32.gmra.mxu0 %v1285
    %v1425 = vpop.f32.mrf.mxu0
    %v1426 = vadd.f32 0.0, %v1425
    %v1427 = vpop.f32.mrf.mxu0
    %1428 = vmatprep.mubr.f32.mxu0 0.0
    %1429 = vmatmul.mubr.f32.gmra.mxu0 %v1288
    %v1430 = vpop.f32.mrf.mxu0
    %v1431 = vadd.f32 0.0, %v1430
    %v1432 = vpop.f32.mrf.mxu0
    %1433 = vmatprep.mubr.f32.mxu0 0.0
    %1434 = vmatmul.mubr.f32.gmra.mxu0 %v1293
    %v1435 = vpop.f32.mrf.mxu0
    %v1436 = vadd.f32 0.0, %v1435
    %v1437 = vpop.f32.mrf.mxu0
    %1438 = vmatprep.mubr.f32.mxu0 0.0
    %1439 = vmatmul.mubr.f32.gmra.mxu0 %v1296
    %v1440 = vpop.f32.mrf.mxu0
    %v1441 = vadd.f32 0.0, %v1440
    %v1442 = vpop.f32.mrf.mxu0
    %1443 = vdwg.mxu0
    %1444 = vmatprep.subr.mxu0 0.0
    %1445 = vmatpush1.msra.mxu0 %v1176
    %1446 = vmatprep.subr.mxu0 0.0
    %1447 = vmatpush1.msra.mxu0 %v1175
    %1448 = vmatprep.subr.mxu0 0.0
    %1449 = vmatpush1.msra.mxu0 %v1174
    %1450 = vmatprep.subr.mxu0 0.0
    %1451 = vmatpush1.msra.mxu0 %v1173
    %1452 = vmatprep.subr.mxu0 0.0
    %1453 = vmatpush1.msra.mxu0 %v1172
    %1454 = vmatprep.subr.mxu0 0.0
    %1455 = vmatpush1.msra.mxu0 %v1171
    %1456 = vmatprep.subr.mxu0 0.0
    %1457 = vmatpush1.msra.mxu0 %v1170
    %1458 = vmatprep.subr.mxu0 0.0
    %1459 = vmatpush1.msra.mxu0 %v1169
    %1460 = vmatprep.subr.mxu0 0.0
    %1461 = vmatpush1.msra.mxu0 %v1168
    %1462 = vmatprep.subr.mxu0 0.0
    %1463 = vmatpush1.msra.mxu0 %v1167
    %1464 = vmatprep.subr.mxu0 0.0
    %1465 = vmatpush1.msra.mxu0 %v1166
    %1466 = vmatprep.subr.mxu0 0.0
    %1467 = vmatpush1.msra.mxu0 %v1165
    %1468 = vmatprep.subr.mxu0 0.0
    %1469 = vmatpush1.msra.mxu0 %v1164
    %1470 = vmatprep.subr.mxu0 0.0
    %1471 = vmatpush1.msra.mxu0 %v1163
    %1472 = vmatprep.subr.mxu0 0.0
    %1473 = vmatpush1.msra.mxu0 %v1162
    %1474 = vmatprep.subr.mxu0 0.0
    %1475 = vmatpush1.msra.mxu0 %v1161
    %1476 = vmatprep.subr.mxu0 0.0
    %1477 = vmatpush2.msra.mxu0 0.0
    %1478 = vmatprep.subr.mxu0 0.0
    %1479 = vmatpush2.msra.mxu0 0.0
    %1480 = vmatprep.subr.mxu0 0.0
    %1481 = vmatpush2.msra.mxu0 0.0
    %1482 = vmatprep.subr.mxu0 0.0
    %1483 = vmatpush2.msra.mxu0 0.0
    %1484 = vmatprep.subr.mxu0 0.0
    %1485 = vmatpush2.msra.mxu0 0.0
    %1486 = vmatprep.subr.mxu0 0.0
    %1487 = vmatpush2.msra.mxu0 0.0
    %1488 = vmatprep.subr.mxu0 0.0
    %1489 = vmatpush2.msra.mxu0 0.0
    %1490 = vmatprep.subr.mxu0 0.0
    %1491 = vmatpush2.msra.mxu0 0.0
    %1492 = vmatprep.subr.mxu0 0.0
    %1493 = vmatpush2.msra.mxu0 0.0
    %1494 = vmatprep.subr.mxu0 0.0
    %1495 = vmatpush2.msra.mxu0 0.0
    %1496 = vmatprep.subr.mxu0 0.0
    %1497 = vmatpush2.msra.mxu0 0.0
    %1498 = vmatprep.subr.mxu0 0.0
    %1499 = vmatpush2.msra.mxu0 0.0
    %1500 = vmatprep.subr.mxu0 0.0
    %1501 = vmatpush2.msra.mxu0 0.0
    %1502 = vmatprep.subr.mxu0 0.0
    %1503 = vmatpush2.msra.mxu0 0.0
    %1504 = vmatprep.subr.mxu0 0.0
    %1505 = vmatpush2.msra.mxu0 0.0
    %1506 = vmatprep.subr.mxu0 0.0
    %1507 = vmatpush2.msra.mxu0 0.0
    %1508 = vmatprep.mubr.f32.mxu0 0.0
    %1509 = vmatmul.mubr.f32.gmra.mxu0 %v1145
    %v1510 = vpop.f32.mrf.mxu0
    %v1511 = vadd.f32 %v1366, %v1510
    %v1512 = vpop.f32.mrf.mxu0
    %1513 = vmatprep.mubr.f32.mxu0 0.0
    %1514 = vmatmul.mubr.f32.gmra.mxu0 %v1146
    %v1515 = vpop.f32.mrf.mxu0
    %v1516 = vadd.f32 %v1371, %v1515
    %v1517 = vpop.f32.mrf.mxu0
    %1518 = vmatprep.mubr.f32.mxu0 0.0
    %1519 = vmatmul.mubr.f32.gmra.mxu0 %v1147
    %v1520 = vpop.f32.mrf.mxu0
    %v1521 = vadd.f32 %v1376, %v1520
    %v1522 = vpop.f32.mrf.mxu0
    %1523 = vmatprep.mubr.f32.mxu0 0.0
    %1524 = vmatmul.mubr.f32.gmra.mxu0 %v1148
    %v1525 = vpop.f32.mrf.mxu0
    %v1526 = vadd.f32 %v1381, %v1525
    %v1527 = vpop.f32.mrf.mxu0
    %1528 = vmatprep.mubr.f32.mxu0 0.0
    %1529 = vmatmul.mubr.f32.gmra.mxu0 %v1149
    %v1530 = vpop.f32.mrf.mxu0
    %v1531 = vadd.f32 %v1386, %v1530
    %v1532 = vpop.f32.mrf.mxu0
    %1533 = vmatprep.mubr.f32.mxu0 0.0
    %1534 = vmatmul.mubr.f32.gmra.mxu0 %v1150
    %v1535 = vpop.f32.mrf.mxu0
    %v1536 = vadd.f32 %v1391, %v1535
    %v1537 = vpop.f32.mrf.mxu0
    %1538 = vmatprep.mubr.f32.mxu0 0.0
    %1539 = vmatmul.mubr.f32.gmra.mxu0 %v1151
    %v1540 = vpop.f32.mrf.mxu0
    %v1541 = vadd.f32 %v1396, %v1540
    %v1542 = vpop.f32.mrf.mxu0
    %1543 = vmatprep.mubr.f32.mxu0 0.0
    %1544 = vmatmul.mubr.f32.gmra.mxu0 %v1152
    %v1545 = vpop.f32.mrf.mxu0
    %v1546 = vadd.f32 %v1401, %v1545
    %v1547 = vpop.f32.mrf.mxu0
    %1548 = vmatprep.mubr.f32.mxu0 0.0
    %1549 = vmatmul.mubr.f32.gmra.mxu0 %v1153
    %v1550 = vpop.f32.mrf.mxu0
    %v1551 = vadd.f32 %v1406, %v1550
    %v1552 = vpop.f32.mrf.mxu0
    %1553 = vmatprep.mubr.f32.mxu0 0.0
    %1554 = vmatmul.mubr.f32.gmra.mxu0 %v1154
    %v1555 = vpop.f32.mrf.mxu0
    %v1556 = vadd.f32 %v1411, %v1555
    %v1557 = vpop.f32.mrf.mxu0
    %1558 = vmatprep.mubr.f32.mxu0 0.0
    %1559 = vmatmul.mubr.f32.gmra.mxu0 %v1155
    %v1560 = vpop.f32.mrf.mxu0
    %v1561 = vadd.f32 %v1416, %v1560
    %v1562 = vpop.f32.mrf.mxu0
    %1563 = vmatprep.mubr.f32.mxu0 0.0
    %1564 = vmatmul.mubr.f32.gmra.mxu0 %v1156
    %v1565 = vpop.f32.mrf.mxu0
    %v1566 = vadd.f32 %v1421, %v1565
    %v1567 = vpop.f32.mrf.mxu0
    %1568 = vmatprep.mubr.f32.mxu0 0.0
    %1569 = vmatmul.mubr.f32.gmra.mxu0 %v1157
    %v1570 = vpop.f32.mrf.mxu0
    %v1571 = vadd.f32 %v1426, %v1570
    %v1572 = vpop.f32.mrf.mxu0
    %1573 = vmatprep.mubr.f32.mxu0 0.0
    %1574 = vmatmul.mubr.f32.gmra.mxu0 %v1158
    %v1575 = vpop.f32.mrf.mxu0
    %v1576 = vadd.f32 %v1431, %v1575
    %v1577 = vpop.f32.mrf.mxu0
    %1578 = vmatprep.mubr.f32.mxu0 0.0
    %1579 = vmatmul.mubr.f32.gmra.mxu0 %v1159
    %v1580 = vpop.f32.mrf.mxu0
    %v1581 = vadd.f32 %v1436, %v1580
    %v1582 = vpop.f32.mrf.mxu0
    %1583 = vmatprep.mubr.f32.mxu0 0.0
    %1584 = vmatmul.mubr.f32.gmra.mxu0 %v1160
    %v1585 = vpop.f32.mrf.mxu0
    %v1586 = vadd.f32 %v1441, %v1585
    %v1587 = vpop.f32.mrf.mxu0
    %1588 = vdwg.mxu0
    %v1590 = vlaneseq
    %v1591 = vshrl.u32 %v1590, 7
    %v1592 = vsub.s32 0, %v1591
    %v1593 = vrot.slane %v1193, %v1592
    %v1595 = vadd.f32 %v1511, %v1593
    %v1596 = vadd.f32 %v1516, %v1593
    %v1597 = vadd.f32 %v1521, %v1593
    %v1598 = vadd.f32 %v1526, %v1593
    %v1599 = vadd.f32 %v1531, %v1593
    %v1600 = vadd.f32 %v1536, %v1593
    %v1601 = vadd.f32 %v1541, %v1593
    %v1602 = vadd.f32 %v1546, %v1593
    %v1603 = vadd.f32 %v1551, %v1593
    %v1604 = vadd.f32 %v1556, %v1593
    %v1605 = vadd.f32 %v1561, %v1593
    %v1606 = vadd.f32 %v1566, %v1593
    %v1607 = vadd.f32 %v1571, %v1593
    %v1608 = vadd.f32 %v1576, %v1593
    %v1609 = vadd.f32 %v1581, %v1593
    %v1610 = vadd.f32 %v1586, %v1593
    %v1611 = vlaneseq
    %v1612 = vand.u32 %v1611, 127
    %vm1613 = vcmp.lt.s32.totalorder %v1612, 8
    %v1614 = vsel %vm1613, %v1595, -1e+30
    %v1615 = vsel %vm1613, %v1596, -1e+30
    %v1616 = vsel %vm1613, %v1597, -1e+30
    %v1617 = vsel %vm1613, %v1598, -1e+30
    %v1618 = vsel %vm1613, %v1599, -1e+30
    %v1619 = vsel %vm1613, %v1600, -1e+30
    %v1620 = vsel %vm1613, %v1601, -1e+30
    %v1621 = vsel %vm1613, %v1602, -1e+30
    %v1622 = vsel %vm1613, %v1603, -1e+30
    %v1623 = vsel %vm1613, %v1604, -1e+30
    %v1624 = vsel %vm1613, %v1605, -1e+30
    %v1625 = vsel %vm1613, %v1606, -1e+30
    %v1626 = vsel %vm1613, %v1607, -1e+30
    %v1627 = vsel %vm1613, %v1608, -1e+30
    %v1628 = vsel %vm1613, %v1609, -1e+30
    %v1629 = vsel %vm1613, %v1610, -1e+30
    %1630 = vmax.xlane.f32.xlu0 %v1614
    %v1631 = vpop.xlane.xlu0 %1630
    %1632 = vmax.xlane.f32.xlu0 %v1615
    %v1633 = vpop.xlane.xlu0 %1632
    %1634 = vmax.xlane.f32.xlu0 %v1616
    %v1635 = vpop.xlane.xlu0 %1634
    %1636 = vmax.xlane.f32.xlu0 %v1617
    %v1637 = vpop.xlane.xlu0 %1636
    %1638 = vmax.xlane.f32.xlu0 %v1618
    %v1639 = vpop.xlane.xlu0 %1638
    %1640 = vmax.xlane.f32.xlu0 %v1619
    %v1641 = vpop.xlane.xlu0 %1640
    %1642 = vmax.xlane.f32.xlu0 %v1620
    %v1643 = vpop.xlane.xlu0 %1642
    %1644 = vmax.xlane.f32.xlu0 %v1621
    %v1645 = vpop.xlane.xlu0 %1644
    %1646 = vmax.xlane.f32.xlu0 %v1622
    %v1647 = vpop.xlane.xlu0 %1646
    %1648 = vmax.xlane.f32.xlu0 %v1623
    %v1649 = vpop.xlane.xlu0 %1648
    %1650 = vmax.xlane.f32.xlu0 %v1624
    %v1651 = vpop.xlane.xlu0 %1650
    %1652 = vmax.xlane.f32.xlu0 %v1625
    %v1653 = vpop.xlane.xlu0 %1652
    %1654 = vmax.xlane.f32.xlu0 %v1626
    %v1655 = vpop.xlane.xlu0 %1654
    %1656 = vmax.xlane.f32.xlu0 %v1627
    %v1657 = vpop.xlane.xlu0 %1656
    %1658 = vmax.xlane.f32.xlu0 %v1628
    %v1659 = vpop.xlane.xlu0 %1658
    %1660 = vmax.xlane.f32.xlu0 %v1629
    %v1661 = vpop.xlane.xlu0 %1660
    %v1662 = vsub.f32 %v1614, %v1631
    %v1663 = vsub.f32 %v1615, %v1633
    %v1664 = vsub.f32 %v1616, %v1635
    %v1665 = vsub.f32 %v1617, %v1637
    %v1666 = vsub.f32 %v1618, %v1639
    %v1667 = vsub.f32 %v1619, %v1641
    %v1668 = vsub.f32 %v1620, %v1643
    %v1669 = vsub.f32 %v1621, %v1645
    %v1670 = vsub.f32 %v1622, %v1647
    %v1671 = vsub.f32 %v1623, %v1649
    %v1672 = vsub.f32 %v1624, %v1651
    %v1673 = vsub.f32 %v1625, %v1653
    %v1674 = vsub.f32 %v1626, %v1655
    %v1675 = vsub.f32 %v1627, %v1657
    %v1676 = vsub.f32 %v1628, %v1659
    %v1677 = vsub.f32 %v1629, %v1661
    %v1678 = vmul.f32 %v1662, 1.442695
    %v1679 = vpow.pop %v1678
    %v1680 = vmul.f32 %v1663, 1.442695
    %v1681 = vpow.pop %v1680
    %v1682 = vmul.f32 %v1664, 1.442695
    %v1683 = vpow.pop %v1682
    %v1684 = vmul.f32 %v1665, 1.442695
    %v1685 = vpow.pop %v1684
    %v1686 = vmul.f32 %v1666, 1.442695
    %v1687 = vpow.pop %v1686
    %v1688 = vmul.f32 %v1667, 1.442695
    %v1689 = vpow.pop %v1688
    %v1690 = vmul.f32 %v1668, 1.442695
    %v1691 = vpow.pop %v1690
    %v1692 = vmul.f32 %v1669, 1.442695
    %v1693 = vpow.pop %v1692
    %v1694 = vmul.f32 %v1670, 1.442695
    %v1695 = vpow.pop %v1694
    %v1696 = vmul.f32 %v1671, 1.442695
    %v1697 = vpow.pop %v1696
    %v1698 = vmul.f32 %v1672, 1.442695
    %v1699 = vpow.pop %v1698
    %v1700 = vmul.f32 %v1673, 1.442695
    %v1701 = vpow.pop %v1700
    %v1702 = vmul.f32 %v1674, 1.442695
    %v1703 = vpow.pop %v1702
    %v1704 = vmul.f32 %v1675, 1.442695
    %v1705 = vpow.pop %v1704
    %v1706 = vmul.f32 %v1676, 1.442695
    %v1707 = vpow.pop %v1706
    %v1708 = vmul.f32 %v1677, 1.442695
    %v1709 = vpow.pop %v1708
    %1710 = vadd.xlane.f32.xlu0 %v1679
    %v1711 = vpop.xlane.xlu0 %1710
    %1712 = vadd.xlane.f32.xlu0 %v1681
    %v1713 = vpop.xlane.xlu0 %1712
    %1714 = vadd.xlane.f32.xlu0 %v1683
    %v1715 = vpop.xlane.xlu0 %1714
    %1716 = vadd.xlane.f32.xlu0 %v1685
    %v1717 = vpop.xlane.xlu0 %1716
    %1718 = vadd.xlane.f32.xlu0 %v1687
    %v1719 = vpop.xlane.xlu0 %1718
    %1720 = vadd.xlane.f32.xlu0 %v1689
    %v1721 = vpop.xlane.xlu0 %1720
    %1722 = vadd.xlane.f32.xlu0 %v1691
    %v1723 = vpop.xlane.xlu0 %1722
    %1724 = vadd.xlane.f32.xlu0 %v1693
    %v1725 = vpop.xlane.xlu0 %1724
    %1726 = vadd.xlane.f32.xlu0 %v1695
    %v1727 = vpop.xlane.xlu0 %1726
    %1728 = vadd.xlane.f32.xlu0 %v1697
    %v1729 = vpop.xlane.xlu0 %1728
    %1730 = vadd.xlane.f32.xlu0 %v1699
    %v1731 = vpop.xlane.xlu0 %1730
    %1732 = vadd.xlane.f32.xlu0 %v1701
    %v1733 = vpop.xlane.xlu0 %1732
    %1734 = vadd.xlane.f32.xlu0 %v1703
    %v1735 = vpop.xlane.xlu0 %1734
    %1736 = vadd.xlane.f32.xlu0 %v1705
    %v1737 = vpop.xlane.xlu0 %1736
    %1738 = vadd.xlane.f32.xlu0 %v1707
    %v1739 = vpop.xlane.xlu0 %1738
    %1740 = vadd.xlane.f32.xlu0 %v1709
    %v1741 = vpop.xlane.xlu0 %1740
    %v1742 = vlog2.pop %v1711
    %v1743 = vmul.f32 %v1742, 0.6931472
    %v1744 = vlog2.pop %v1713
    %v1745 = vmul.f32 %v1744, 0.6931472
    %v1746 = vlog2.pop %v1715
    %v1747 = vmul.f32 %v1746, 0.6931472
    %v1748 = vlog2.pop %v1717
    %v1749 = vmul.f32 %v1748, 0.6931472
    %v1750 = vlog2.pop %v1719
    %v1751 = vmul.f32 %v1750, 0.6931472
    %v1752 = vlog2.pop %v1721
    %v1753 = vmul.f32 %v1752, 0.6931472
    %v1754 = vlog2.pop %v1723
    %v1755 = vmul.f32 %v1754, 0.6931472
    %v1756 = vlog2.pop %v1725
    %v1757 = vmul.f32 %v1756, 0.6931472
    %v1758 = vlog2.pop %v1727
    %v1759 = vmul.f32 %v1758, 0.6931472
    %v1760 = vlog2.pop %v1729
    %v1761 = vmul.f32 %v1760, 0.6931472
    %v1762 = vlog2.pop %v1731
    %v1763 = vmul.f32 %v1762, 0.6931472
    %v1764 = vlog2.pop %v1733
    %v1765 = vmul.f32 %v1764, 0.6931472
    %v1766 = vlog2.pop %v1735
    %v1767 = vmul.f32 %v1766, 0.6931472
    %v1768 = vlog2.pop %v1737
    %v1769 = vmul.f32 %v1768, 0.6931472
    %v1770 = vlog2.pop %v1739
    %v1771 = vmul.f32 %v1770, 0.6931472
    %v1772 = vlog2.pop %v1741
    %v1773 = vmul.f32 %v1772, 0.6931472
    %v1774 = vsub.f32 %v1662, %v1743
    %v1775 = vsub.f32 %v1663, %v1745
    %v1776 = vsub.f32 %v1664, %v1747
    %v1777 = vsub.f32 %v1665, %v1749
    %v1778 = vsub.f32 %v1666, %v1751
    %v1779 = vsub.f32 %v1667, %v1753
    %v1780 = vsub.f32 %v1668, %v1755
    %v1781 = vsub.f32 %v1669, %v1757
    %v1782 = vsub.f32 %v1670, %v1759
    %v1783 = vsub.f32 %v1671, %v1761
    %v1784 = vsub.f32 %v1672, %v1763
    %v1785 = vsub.f32 %v1673, %v1765
    %v1786 = vsub.f32 %v1674, %v1767
    %v1787 = vsub.f32 %v1675, %v1769
    %v1788 = vsub.f32 %v1676, %v1771
    %v1789 = vsub.f32 %v1677, %v1773
    %1790 = vst [vmem:[#allocation16] sm:$0xff] %v1774
    %1791 = vst [vmem:[#allocation16 + $0x8] sm:$0xff] %v1775
    %1792 = vst [vmem:[#allocation16 + $0x10] sm:$0xff] %v1776
    %1793 = vst [vmem:[#allocation16 + $0x18] sm:$0xff] %v1777
    %1794 = vst [vmem:[#allocation16 + $0x20] sm:$0xff] %v1778
    %1795 = vst [vmem:[#allocation16 + $0x28] sm:$0xff] %v1779
    %1796 = vst [vmem:[#allocation16 + $0x30] sm:$0xff] %v1780
    %1797 = vst [vmem:[#allocation16 + $0x38] sm:$0xff] %v1781
    %1798 = vst [vmem:[#allocation16 + $0x40] sm:$0xff] %v1782
    %1799 = vst [vmem:[#allocation16 + $0x48] sm:$0xff] %v1783
    %1800 = vst [vmem:[#allocation16 + $0x50] sm:$0xff] %v1784
    %1801 = vst [vmem:[#allocation16 + $0x58] sm:$0xff] %v1785
    %1802 = vst [vmem:[#allocation16 + $0x60] sm:$0xff] %v1786
    %1803 = vst [vmem:[#allocation16 + $0x68] sm:$0xff] %v1787
    %1804 = vst [vmem:[#allocation16 + $0x70] sm:$0xff] %v1788
    %1805 = vst [vmem:[#allocation16 + $0x78] sm:$0xff] %v1789
    // Predicated region
    $region78: #{tpu_custom_call.1} parent=1 // pred_check
      _
    $region79: #{tpu_custom_call.1} parent=1 // pred_check_branch
      %1807 = sbr.rel (0) target = $region81
    $region80: #{tpu_custom_call.1} parent=1 // pred_region
      %s1809 = ssub.s32 2048, 2048
      %1810 = vsyncadd [#allocation4], %s1809
      %s1811 = sshll.u32 [#allocation16], 4
      %s1812 = int_to_ptr.vmem [resolvable:$true] %s1811
      %1817 = dma.vmem_to_hbm [thread:$0]  %s1812, 2048, %s11, [#allocation4], 128, 128, 8
    $region81: #{tpu_custom_call.1} parent=1 // pred_fallthru
      _
    // Predicated region
    $region82: #{tpu_custom_call.1} parent=1 // pred_check
      _
    $region83: #{tpu_custom_call.1} parent=1 // pred_check_branch
      %1819 = sbr.rel (0) target = $region85
    $region84: #{tpu_custom_call.1} parent=1 // pred_region
      %1820 = dma.done [#allocation4], 2048
    $region85: #{tpu_custom_call.1} parent=1 // pred_fallthru
      _
    %1821 = vsyncpa [#allocation3], 1
    %1822 = vsyncpa [#allocation6], 1
    %1823 = vsyncpa [#allocation9], 1
    %1824 = vsyncpa [#allocation12], 1
    %1825 = vsyncpa [#allocation15], 1
    %1826 = vsyncpa [#allocation4], 1

</llo_original>
